<compile_context>
chip_gen: v5e
topology: v5e:2x2
jax: 0.10.0
libtpu: 0.0.40
codegen_flags: <defaults>
</compile_context>

<pallas_src>
import numpy as np
import jax
import jax.numpy as jnp
from jax import lax
from jax.experimental import pallas as pl
from jax.experimental.pallas import tpu as pltpu


def lstm_chunk_kernel(x_ref, lens_ref, wih_ref, whh_ref, b_ref, o_ref,
                      h_sc, c_sc, gin_sc):
    """One grid step == one chunk of `tc` LSTM time steps.

    x_ref:    (tc, Bp, D)      input chunk
    lens_ref: (Bp, 1) int32    sequence lengths (padded rows = 0)
    wih_ref:  (D, 4*Hp)        W_ih^T   (gate-padded)
    whh_ref:  (Hp, 4*Hp)       W_hh^T   (gate-padded)
    b_ref:    (1, 4*Hp) f32    b_ih + b_hh (gate-padded)
    o_ref:    (tc, Bp, Hp)     output chunk (lane-dense, written back once per chunk)
    h_sc/c_sc:(Bp, Hp) f32     recurrent state, persists across chunks
    gin_sc:   (tc, Bp, 4*Hp)   precomputed input-projection gates for this chunk
    """
    c_idx = pl.program_id(0)

    @pl.when(c_idx == 0)
    def _():
        h_sc[...] = jnp.zeros_like(h_sc)
        c_sc[...] = jnp.zeros_like(c_sc)

    tc, bp, d = x_ref.shape
    hp = h_sc.shape[-1]

    # Hoisted input projection: ONE big MXU matmul for the whole chunk.
    x_flat = x_ref[...].reshape(tc * bp, d)
    gin = jnp.dot(x_flat, wih_ref[...], preferred_element_type=jnp.float32)
    gin_sc[...] = (gin + b_ref[...]).reshape(tc, bp, 4 * hp)

    lens = lens_ref[...]          # (bp, 1) int32
    whh = whh_ref[...]            # (hp, 4*hp)
    t0 = c_idx * tc

    def step(t, carry):
        h_prev, c_prev = carry
        # Only the recurrent matmul stays on the per-step critical path.
        gates = gin_sc[t] + jnp.dot(h_prev.astype(whh.dtype), whh,
                                    preferred_element_type=jnp.float32)
        # hp is a multiple of 128 -> lane-aligned (free) gate slices.
        i_g = jax.nn.sigmoid(gates[:, 0 * hp:1 * hp])
        f_g = jax.nn.sigmoid(gates[:, 1 * hp:2 * hp])
        g_g = jnp.tanh(gates[:, 2 * hp:3 * hp])
        o_g = jax.nn.sigmoid(gates[:, 3 * hp:4 * hp])

        c_new = f_g * c_prev + i_g * g_g
        h_new = o_g * jnp.tanh(c_new)

        # Packed-sequence semantics: freeze state / zero output past seq_len.
        mask = (t0 + t) < lens                     # (bp, 1) bool
        o_ref[t] = jnp.where(mask, h_new, 0.0)
        h_next = jnp.where(mask, h_new, h_prev)
        c_next = jnp.where(mask, c_new, c_prev)
        return h_next, c_next

    h_fin, c_fin = lax.fori_loop(0, tc, step, (h_sc[...], c_sc[...]),
                                 unroll=bool(tc <= 16))
    h_sc[...] = h_fin
    c_sc[...] = c_fin


def encoder_forward(seq_batch, seq_len, params, *,
                    compute_dtype=jnp.float32, time_chunk=128):
    """seq_batch: [B, T, D] batch_first (as in PyTorch); seq_len: numpy int array [B].
    Returns [B, max(seq_len), H], matching pad_packed_sequence(batch_first=True)."""
    w_ih, w_hh, b_ih, b_hh = params            # (4H,D), (4H,H), (4H,), (4H,)
    B, T, D = seq_batch.shape
    H = w_hh.shape[1]

    lens_np = np.asarray(seq_len)
    t_max = int(lens_np.max())                 # pad_packed_sequence pads to max(seq_len)

    Bp = int(-(-B // 8) * 8)                   # pad batch to sublane multiple (>=8)
    Hp = int(-(-H // 128) * 128)               # pad hidden to lane multiple (128)
    tc = max(1, min(int(time_chunk), t_max))   # time-chunk per grid step
    Tp = int(-(-t_max // tc) * tc)             # pad time to a multiple of tc

    # ---- input: time-major, padded (padded rows/steps masked out by seq_len) ----
    x = jnp.transpose(seq_batch, (1, 0, 2))[:t_max]                    # (t_max, B, D)
    x = jnp.pad(x, ((0, Tp - t_max), (0, Bp - B), (0, 0))).astype(compute_dtype)

    lens = jnp.zeros((Bp, 1), jnp.int32)
    lens = lens.at[:B, 0].set(jnp.asarray(lens_np, dtype=jnp.int32))

    # ---- weights: pad each of the 4 gate blocks H -> Hp (zeros keep padding inert) ----
    def pad_gate_rows(w):                       # (4H, K) -> (4*Hp, K)
        w4 = w.reshape(4, H, -1)
        w4 = jnp.pad(w4, ((0, 0), (0, Hp - H), (0, 0)))
        return w4.reshape(4 * Hp, -1)

    wih_t = pad_gate_rows(w_ih).T.astype(compute_dtype)                # (D, 4Hp)
    whh_p = jnp.pad(pad_gate_rows(w_hh), ((0, 0), (0, Hp - H)))        # (4Hp, Hp)
    whh_t = whh_p.T.astype(compute_dtype)                              # (Hp, 4Hp)
    bias = pad_gate_rows((b_ih + b_hh).reshape(4 * H, 1)).reshape(1, 4 * Hp)
    bias = bias.astype(jnp.float32)

    grid_spec = pltpu.PrefetchScalarGridSpec(
        num_scalar_prefetch=0,
        grid=(Tp // tc,),
        in_specs=[
            pl.BlockSpec((tc, Bp, D), lambda c: (c, 0, 0)),      # x chunk (pipelined)
            pl.BlockSpec((Bp, 1), lambda c: (0, 0)),             # lens (resident)
            pl.BlockSpec((D, 4 * Hp), lambda c: (0, 0)),         # W_ih^T (resident)
            pl.BlockSpec((Hp, 4 * Hp), lambda c: (0, 0)),        # W_hh^T (resident)
            pl.BlockSpec((1, 4 * Hp), lambda c: (0, 0)),         # bias (resident)
        ],
        out_specs=pl.BlockSpec((tc, Bp, Hp), lambda c: (c, 0, 0)),   # lane-dense chunk
        scratch_shapes=[
            pltpu.VMEM((Bp, Hp), jnp.float32),            # h state (persists)
            pltpu.VMEM((Bp, Hp), jnp.float32),            # c state (persists)
            pltpu.VMEM((tc, Bp, 4 * Hp), jnp.float32),    # chunk input-projection gates
        ],
    )

    out_tbh = pl.pallas_call(
        lstm_chunk_kernel,
        out_shape=jax.ShapeDtypeStruct((Tp, Bp, Hp), jnp.float32),
        grid_spec=grid_spec,
        compiler_params=pltpu.CompilerParams(
            dimension_semantics=("arbitrary",),   # recurrent over time chunks
        ),
    )(x, lens, wih_t, whh_t, bias)

    # strip padding, back to batch_first
    return jnp.transpose(out_tbh[:t_max, :B, :H], (1, 0, 2))


def init_lstm_params(key, word_dim, hidden_dim):
    """Deterministic init matching PyTorch LSTM param shapes: U(-1/sqrt(H), 1/sqrt(H))."""
    k1, k2, k3, k4 = jax.random.split(key, 4)
    bound = 1.0 / np.sqrt(hidden_dim)
    w_ih = jax.random.uniform(k1, (4 * hidden_dim, word_dim), jnp.float32, -bound, bound)
    w_hh = jax.random.uniform(k2, (4 * hidden_dim, hidden_dim), jnp.float32, -bound, bound)
    b_ih = jax.random.uniform(k3, (4 * hidden_dim,), jnp.float32, -bound, bound)
    b_hh = jax.random.uniform(k4, (4 * hidden_dim,), jnp.float32, -bound, bound)
    return w_ih, w_hh, b_ih, b_hh


if __name__ == "__main__":
    B, T, D, H = 2, 8, 32, 32

    key = jax.random.PRNGKey(0)
    k_x, k_p = jax.random.split(key)
    seq_batch = jax.random.normal(k_x, (B, T, D), dtype=jnp.float32)   # batch_first [B, T, D]
    seq_len = np.array([8, 5], dtype=np.int64)                          # per-batch lengths

    params = init_lstm_params(k_p, D, H)

    out = encoder_forward(seq_batch, seq_len, params)     # (B, max(seq_len), H)
    out = jax.block_until_ready(out)

    assert out.shape == (B, int(seq_len.max()), H)
    # outputs past each sequence length must be exactly zero (pad_packed_sequence semantics)
    assert bool(jnp.all(out[1, 5:, :] == 0.0))
    print("KERNEL_OK")
</pallas_src>

<mosaic_0001>
module attributes {stable_mosaic.version = 11 : i64} {
  func.func @lstm_chunk_kernel(%arg0: i32, %arg1: memref<8x8x32xf32, #tpu.memory_space<vmem>>, %arg2: memref<8x1xi32, #tpu.memory_space<vmem>>, %arg3: memref<32x512xf32, #tpu.memory_space<vmem>>, %arg4: memref<128x512xf32, #tpu.memory_space<vmem>>, %arg5: memref<1x512xf32, #tpu.memory_space<vmem>>, %arg6: memref<8x8x128xf32, #tpu.memory_space<vmem>>, %arg7: memref<8x128xf32, #tpu.memory_space<vmem>>, %arg8: memref<8x128xf32, #tpu.memory_space<vmem>>, %arg9: memref<8x8x512xf32, #tpu.memory_space<vmem>>) attributes {dimension_semantics = [#tpu.dimension_semantics<arbitrary>], iteration_bounds = array<i64: 1>, scalar_prefetch = 0 : i64, scratch_operands = 3 : i64, tpu.core_type = #tpu.core_type<tc>, window_params = [{transform_indices = @transform_0, window_bounds = array<i64: 8, 8, 32>}, {pipeline_mode = #tpu.pipeline_mode<synchronous>, transform_indices = @transform_1, window_bounds = array<i64: 8, 1>}, {pipeline_mode = #tpu.pipeline_mode<synchronous>, transform_indices = @transform_2, window_bounds = array<i64: 32, 512>}, {pipeline_mode = #tpu.pipeline_mode<synchronous>, transform_indices = @transform_3, window_bounds = array<i64: 128, 512>}, {pipeline_mode = #tpu.pipeline_mode<synchronous>, transform_indices = @transform_4, window_bounds = array<i64: 1, 512>}, {transform_indices = @transform_5, window_bounds = array<i64: 8, 8, 128>}]} {
    %c0_i32 = arith.constant 0 : i32
    %0 = arith.cmpi eq, %arg0, %c0_i32 : i32
    %1 = arith.extui %0 : i1 to i32
    %c0_i32_0 = arith.constant 0 : i32
    %2 = arith.cmpi ne, %1, %c0_i32_0 : i32
    scf.if %2 {
      %cst_96 = arith.constant 0.000000e+00 : f32
      %395 = vector.broadcast %cst_96 : f32 to vector<8x128xf32>
      %c0_97 = arith.constant 0 : index
      %c0_98 = arith.constant 0 : index
      %396 = vector.load %arg7[%c0_97, %c0_98] : memref<8x128xf32, #tpu.memory_space<vmem>>, vector<8x128xf32>
      tpu.vector_store %arg7[%c0_97, %c0_98], %395 {strides = array<i32>} : memref<8x128xf32, #tpu.memory_space<vmem>>, vector<8x128xf32>,
      %cst_99 = arith.constant 0.000000e+00 : f32
      %397 = vector.broadcast %cst_99 : f32 to vector<8x128xf32>
      %c0_100 = arith.constant 0 : index
      %c0_101 = arith.constant 0 : index
      %398 = vector.load %arg8[%c0_100, %c0_101] : memref<8x128xf32, #tpu.memory_space<vmem>>, vector<8x128xf32>
      tpu.vector_store %arg8[%c0_100, %c0_101], %397 {strides = array<i32>} : memref<8x128xf32, #tpu.memory_space<vmem>>, vector<8x128xf32>,
    } else {
    }
    %c0 = arith.constant 0 : index
    %c0_1 = arith.constant 0 : index
    %c0_2 = arith.constant 0 : index
    %3 = vector.load %arg1[%c0, %c0_1, %c0_2] : memref<8x8x32xf32, #tpu.memory_space<vmem>>, vector<8x8x32xf32>
    %4 = vector.shape_cast %3 : vector<8x8x32xf32> to vector<64x32xf32>
    %c0_3 = arith.constant 0 : index
    %c0_4 = arith.constant 0 : index
    %5 = vector.load %arg3[%c0_3, %c0_4] : memref<32x512xf32, #tpu.memory_space<vmem>>, vector<32x512xf32>
    %cst = arith.constant dense<0.000000e+00> : vector<64x512xf32>
    %6 = tpu.matmul %4, %5, %cst {dimension_numbers = #tpu.dot_dimension_numbers<[1], [0], [0], [1], [0, 0, 1, 1], [], []>} : vector<64x32xf32>, vector<32x512xf32>, vector<64x512xf32> -> vector<64x512xf32>
    %c0_5 = arith.constant 0 : index
    %c0_6 = arith.constant 0 : index
    %7 = vector.load %arg5[%c0_5, %c0_6] : memref<1x512xf32, #tpu.memory_space<vmem>>, vector<1x512xf32>
    %8 = vector.broadcast %7 : vector<1x512xf32> to vector<64x512xf32>
    %9 = arith.addf %6, %8 : vector<64x512xf32>
    %10 = vector.shape_cast %9 : vector<64x512xf32> to vector<8x8x512xf32>
    %c0_7 = arith.constant 0 : index
    %c0_8 = arith.constant 0 : index
    %c0_9 = arith.constant 0 : index
    %11 = vector.load %arg9[%c0_7, %c0_8, %c0_9] : memref<8x8x512xf32, #tpu.memory_space<vmem>>, vector<8x8x512xf32>
    tpu.vector_store %arg9[%c0_7, %c0_8, %c0_9], %10 {strides = array<i32>} : memref<8x8x512xf32, #tpu.memory_space<vmem>>, vector<8x8x512xf32>,
    %c0_10 = arith.constant 0 : index
    %c0_11 = arith.constant 0 : index
    %12 = vector.load %arg2[%c0_10, %c0_11] : memref<8x1xi32, #tpu.memory_space<vmem>>, vector<8x1xi32>
    %c0_12 = arith.constant 0 : index
    %c0_13 = arith.constant 0 : index
    %13 = vector.load %arg4[%c0_12, %c0_13] : memref<128x512xf32, #tpu.memory_space<vmem>>, vector<128x512xf32>
    %c8_i32 = arith.constant 8 : i32
    %14 = arith.muli %arg0, %c8_i32 : i32
    %c0_14 = arith.constant 0 : index
    %c0_15 = arith.constant 0 : index
    %15 = vector.load %arg7[%c0_14, %c0_15] : memref<8x128xf32, #tpu.memory_space<vmem>>, vector<8x128xf32>
    %c0_16 = arith.constant 0 : index
    %c0_17 = arith.constant 0 : index
    %16 = vector.load %arg8[%c0_16, %c0_17] : memref<8x128xf32, #tpu.memory_space<vmem>>, vector<8x128xf32>
    %c0_i32_18 = arith.constant 0 : i32
    %17 = arith.index_cast %c0_i32_18 : i32 to index
    %c0_19 = arith.constant 0 : index
    %c0_20 = arith.constant 0 : index
    %18 = vector.load %arg9[%17, %c0_19, %c0_20] : memref<8x8x512xf32, #tpu.memory_space<vmem>>, vector<1x8x512xf32>
    %19 = vector.shape_cast %18 : vector<1x8x512xf32> to vector<8x512xf32>
    %cst_21 = arith.constant dense<0.000000e+00> : vector<8x512xf32>
    %20 = tpu.matmul %15, %13, %cst_21 {dimension_numbers = #tpu.dot_dimension_numbers<[1], [0], [0], [1], [0, 0, 1, 1], [], []>} : vector<8x128xf32>, vector<128x512xf32>, vector<8x512xf32> -> vector<8x512xf32>
    %21 = arith.addf %19, %20 : vector<8x512xf32>
    %22 = vector.extract_strided_slice %21 {offsets = [0, 0], sizes = [8, 128], strides = [1, 1]} : vector<8x512xf32> to vector<8x128xf32>
    %23 = arith.negf %22 : vector<8x128xf32>
    %24 = math.exp %23 : vector<8x128xf32>
    %cst_22 = arith.constant 1.000000e+00 : f32
    %25 = vector.broadcast %cst_22 : f32 to vector<8x128xf32>
    %26 = arith.addf %25, %24 : vector<8x128xf32>
    %27 = arith.divf %25, %26 : vector<8x128xf32>
    %28 = vector.extract_strided_slice %21 {offsets = [0, 128], sizes = [8, 128], strides = [1, 1]} : vector<8x512xf32> to vector<8x128xf32>
    %29 = arith.negf %28 : vector<8x128xf32>
    %30 = math.exp %29 : vector<8x128xf32>
    %cst_23 = arith.constant 1.000000e+00 : f32
    %31 = vector.broadcast %cst_23 : f32 to vector<8x128xf32>
    %32 = arith.addf %31, %30 : vector<8x128xf32>
    %33 = arith.divf %31, %32 : vector<8x128xf32>
    %34 = vector.extract_strided_slice %21 {offsets = [0, 256], sizes = [8, 128], strides = [1, 1]} : vector<8x512xf32> to vector<8x128xf32>
    %35 = math.tanh %34 : vector<8x128xf32>
    %36 = vector.extract_strided_slice %21 {offsets = [0, 384], sizes = [8, 128], strides = [1, 1]} : vector<8x512xf32> to vector<8x128xf32>
    %37 = arith.negf %36 : vector<8x128xf32>
    %38 = math.exp %37 : vector<8x128xf32>
    %cst_24 = arith.constant 1.000000e+00 : f32
    %39 = vector.broadcast %cst_24 : f32 to vector<8x128xf32>
    %40 = arith.addf %39, %38 : vector<8x128xf32>
    %41 = arith.divf %39, %40 : vector<8x128xf32>
    %42 = arith.mulf %33, %16 : vector<8x128xf32>
    %43 = arith.mulf %27, %35 : vector<8x128xf32>
    %44 = arith.addf %42, %43 : vector<8x128xf32>
    %45 = math.tanh %44 : vector<8x128xf32>
    %46 = arith.mulf %41, %45 : vector<8x128xf32>
    %47 = arith.addi %14, %c0_i32_18 : i32
    %48 = vector.broadcast %47 : i32 to vector<8x1xi32>
    %49 = arith.cmpi slt, %48, %12 : vector<8x1xi32>
    %cst_25 = arith.constant 0.000000e+00 : f32
    %50 = vector.shape_cast %49 : vector<8x1xi1> to vector<8x1xi1>
    %51 = vector.broadcast %50 : vector<8x1xi1> to vector<8x128xi1>
    %52 = vector.broadcast %cst_25 : f32 to vector<8x128xf32>
    %53 = arith.select %51, %46, %52 : vector<8x128xi1>, vector<8x128xf32>
    %54 = arith.index_cast %c0_i32_18 : i32 to index
    %c0_26 = arith.constant 0 : index
    %c0_27 = arith.constant 0 : index
    %55 = vector.load %arg6[%54, %c0_26, %c0_27] : memref<8x8x128xf32, #tpu.memory_space<vmem>>, vector<1x8x128xf32>
    %56 = vector.shape_cast %55 : vector<1x8x128xf32> to vector<8x128xf32>
    %57 = vector.shape_cast %53 : vector<8x128xf32> to vector<1x8x128xf32>
    tpu.vector_store %arg6[%54, %c0_26, %c0_27], %57 {strides = array<i32>} : memref<8x8x128xf32, #tpu.memory_space<vmem>>, vector<1x8x128xf32>,
    %58 = vector.shape_cast %49 : vector<8x1xi1> to vector<8x1xi1>
    %59 = vector.broadcast %58 : vector<8x1xi1> to vector<8x128xi1>
    %60 = arith.select %59, %46, %15 : vector<8x128xi1>, vector<8x128xf32>
    %61 = vector.shape_cast %49 : vector<8x1xi1> to vector<8x1xi1>
    %62 = vector.broadcast %61 : vector<8x1xi1> to vector<8x128xi1>
    %63 = arith.select %62, %44, %16 : vector<8x128xi1>, vector<8x128xf32>
    %c1_i32 = arith.constant 1 : i32
    %64 = arith.index_cast %c1_i32 : i32 to index
    %c0_28 = arith.constant 0 : index
    %c0_29 = arith.constant 0 : index
    %65 = vector.load %arg9[%64, %c0_28, %c0_29] : memref<8x8x512xf32, #tpu.memory_space<vmem>>, vector<1x8x512xf32>
    %66 = vector.shape_cast %65 : vector<1x8x512xf32> to vector<8x512xf32>
    %cst_30 = arith.constant dense<0.000000e+00> : vector<8x512xf32>
    %67 = tpu.matmul %60, %13, %cst_30 {dimension_numbers = #tpu.dot_dimension_numbers<[1], [0], [0], [1], [0, 0, 1, 1], [], []>} : vector<8x128xf32>, vector<128x512xf32>, vector<8x512xf32> -> vector<8x512xf32>
    %68 = arith.addf %66, %67 : vector<8x512xf32>
    %69 = vector.extract_strided_slice %68 {offsets = [0, 0], sizes = [8, 128], strides = [1, 1]} : vector<8x512xf32> to vector<8x128xf32>
    %70 = arith.negf %69 : vector<8x128xf32>
    %71 = math.exp %70 : vector<8x128xf32>
    %cst_31 = arith.constant 1.000000e+00 : f32
    %72 = vector.broadcast %cst_31 : f32 to vector<8x128xf32>
    %73 = arith.addf %72, %71 : vector<8x128xf32>
    %74 = arith.divf %72, %73 : vector<8x128xf32>
    %75 = vector.extract_strided_slice %68 {offsets = [0, 128], sizes = [8, 128], strides = [1, 1]} : vector<8x512xf32> to vector<8x128xf32>
    %76 = arith.negf %75 : vector<8x128xf32>
    %77 = math.exp %76 : vector<8x128xf32>
    %cst_32 = arith.constant 1.000000e+00 : f32
    %78 = vector.broadcast %cst_32 : f32 to vector<8x128xf32>
    %79 = arith.addf %78, %77 : vector<8x128xf32>
    %80 = arith.divf %78, %79 : vector<8x128xf32>
    %81 = vector.extract_strided_slice %68 {offsets = [0, 256], sizes = [8, 128], strides = [1, 1]} : vector<8x512xf32> to vector<8x128xf32>
    %82 = math.tanh %81 : vector<8x128xf32>
    %83 = vector.extract_strided_slice %68 {offsets = [0, 384], sizes = [8, 128], strides = [1, 1]} : vector<8x512xf32> to vector<8x128xf32>
    %84 = arith.negf %83 : vector<8x128xf32>
    %85 = math.exp %84 : vector<8x128xf32>
    %cst_33 = arith.constant 1.000000e+00 : f32
    %86 = vector.broadcast %cst_33 : f32 to vector<8x128xf32>
    %87 = arith.addf %86, %85 : vector<8x128xf32>
    %88 = arith.divf %86, %87 : vector<8x128xf32>
    %89 = arith.mulf %80, %63 : vector<8x128xf32>
    %90 = arith.mulf %74, %82 : vector<8x128xf32>
    %91 = arith.addf %89, %90 : vector<8x128xf32>
    %92 = math.tanh %91 : vector<8x128xf32>
    %93 = arith.mulf %88, %92 : vector<8x128xf32>
    %94 = arith.addi %14, %c1_i32 : i32
    %95 = vector.broadcast %94 : i32 to vector<8x1xi32>
    %96 = arith.cmpi slt, %95, %12 : vector<8x1xi32>
    %cst_34 = arith.constant 0.000000e+00 : f32
    %97 = vector.shape_cast %96 : vector<8x1xi1> to vector<8x1xi1>
    %98 = vector.broadcast %97 : vector<8x1xi1> to vector<8x128xi1>
    %99 = vector.broadcast %cst_34 : f32 to vector<8x128xf32>
    %100 = arith.select %98, %93, %99 : vector<8x128xi1>, vector<8x128xf32>
    %101 = arith.index_cast %c1_i32 : i32 to index
    %c0_35 = arith.constant 0 : index
    %c0_36 = arith.constant 0 : index
    %102 = vector.load %arg6[%101, %c0_35, %c0_36] : memref<8x8x128xf32, #tpu.memory_space<vmem>>, vector<1x8x128xf32>
    %103 = vector.shape_cast %102 : vector<1x8x128xf32> to vector<8x128xf32>
    %104 = vector.shape_cast %100 : vector<8x128xf32> to vector<1x8x128xf32>
    tpu.vector_store %arg6[%101, %c0_35, %c0_36], %104 {strides = array<i32>} : memref<8x8x128xf32, #tpu.memory_space<vmem>>, vector<1x8x128xf32>,
    %105 = vector.shape_cast %96 : vector<8x1xi1> to vector<8x1xi1>
    %106 = vector.broadcast %105 : vector<8x1xi1> to vector<8x128xi1>
    %107 = arith.select %106, %93, %60 : vector<8x128xi1>, vector<8x128xf32>
    %108 = vector.shape_cast %96 : vector<8x1xi1> to vector<8x1xi1>
    %109 = vector.broadcast %108 : vector<8x1xi1> to vector<8x128xi1>
    %110 = arith.select %109, %91, %63 : vector<8x128xi1>, vector<8x128xf32>
    %c2_i32 = arith.constant 2 : i32
    %111 = arith.index_cast %c2_i32 : i32 to index
    %c0_37 = arith.constant 0 : index
    %c0_38 = arith.constant 0 : index
    %112 = vector.load %arg9[%111, %c0_37, %c0_38] : memref<8x8x512xf32, #tpu.memory_space<vmem>>, vector<1x8x512xf32>
    %113 = vector.shape_cast %112 : vector<1x8x512xf32> to vector<8x512xf32>
    %cst_39 = arith.constant dense<0.000000e+00> : vector<8x512xf32>
    %114 = tpu.matmul %107, %13, %cst_39 {dimension_numbers = #tpu.dot_dimension_numbers<[1], [0], [0], [1], [0, 0, 1, 1], [], []>} : vector<8x128xf32>, vector<128x512xf32>, vector<8x512xf32> -> vector<8x512xf32>
    %115 = arith.addf %113, %114 : vector<8x512xf32>
    %116 = vector.extract_strided_slice %115 {offsets = [0, 0], sizes = [8, 128], strides = [1, 1]} : vector<8x512xf32> to vector<8x128xf32>
    %117 = arith.negf %116 : vector<8x128xf32>
    %118 = math.exp %117 : vector<8x128xf32>
    %cst_40 = arith.constant 1.000000e+00 : f32
    %119 = vector.broadcast %cst_40 : f32 to vector<8x128xf32>
    %120 = arith.addf %119, %118 : vector<8x128xf32>
    %121 = arith.divf %119, %120 : vector<8x128xf32>
    %122 = vector.extract_strided_slice %115 {offsets = [0, 128], sizes = [8, 128], strides = [1, 1]} : vector<8x512xf32> to vector<8x128xf32>
    %123 = arith.negf %122 : vector<8x128xf32>
    %124 = math.exp %123 : vector<8x128xf32>
    %cst_41 = arith.constant 1.000000e+00 : f32
    %125 = vector.broadcast %cst_41 : f32 to vector<8x128xf32>
    %126 = arith.addf %125, %124 : vector<8x128xf32>
    %127 = arith.divf %125, %126 : vector<8x128xf32>
    %128 = vector.extract_strided_slice %115 {offsets = [0, 256], sizes = [8, 128], strides = [1, 1]} : vector<8x512xf32> to vector<8x128xf32>
    %129 = math.tanh %128 : vector<8x128xf32>
    %130 = vector.extract_strided_slice %115 {offsets = [0, 384], sizes = [8, 128], strides = [1, 1]} : vector<8x512xf32> to vector<8x128xf32>
    %131 = arith.negf %130 : vector<8x128xf32>
    %132 = math.exp %131 : vector<8x128xf32>
    %cst_42 = arith.constant 1.000000e+00 : f32
    %133 = vector.broadcast %cst_42 : f32 to vector<8x128xf32>
    %134 = arith.addf %133, %132 : vector<8x128xf32>
    %135 = arith.divf %133, %134 : vector<8x128xf32>
    %136 = arith.mulf %127, %110 : vector<8x128xf32>
    %137 = arith.mulf %121, %129 : vector<8x128xf32>
    %138 = arith.addf %136, %137 : vector<8x128xf32>
    %139 = math.tanh %138 : vector<8x128xf32>
    %140 = arith.mulf %135, %139 : vector<8x128xf32>
    %141 = arith.addi %14, %c2_i32 : i32
    %142 = vector.broadcast %141 : i32 to vector<8x1xi32>
    %143 = arith.cmpi slt, %142, %12 : vector<8x1xi32>
    %cst_43 = arith.constant 0.000000e+00 : f32
    %144 = vector.shape_cast %143 : vector<8x1xi1> to vector<8x1xi1>
    %145 = vector.broadcast %144 : vector<8x1xi1> to vector<8x128xi1>
    %146 = vector.broadcast %cst_43 : f32 to vector<8x128xf32>
    %147 = arith.select %145, %140, %146 : vector<8x128xi1>, vector<8x128xf32>
    %148 = arith.index_cast %c2_i32 : i32 to index
    %c0_44 = arith.constant 0 : index
    %c0_45 = arith.constant 0 : index
    %149 = vector.load %arg6[%148, %c0_44, %c0_45] : memref<8x8x128xf32, #tpu.memory_space<vmem>>, vector<1x8x128xf32>
    %150 = vector.shape_cast %149 : vector<1x8x128xf32> to vector<8x128xf32>
    %151 = vector.shape_cast %147 : vector<8x128xf32> to vector<1x8x128xf32>
    tpu.vector_store %arg6[%148, %c0_44, %c0_45], %151 {strides = array<i32>} : memref<8x8x128xf32, #tpu.memory_space<vmem>>, vector<1x8x128xf32>,
    %152 = vector.shape_cast %143 : vector<8x1xi1> to vector<8x1xi1>
    %153 = vector.broadcast %152 : vector<8x1xi1> to vector<8x128xi1>
    %154 = arith.select %153, %140, %107 : vector<8x128xi1>, vector<8x128xf32>
    %155 = vector.shape_cast %143 : vector<8x1xi1> to vector<8x1xi1>
    %156 = vector.broadcast %155 : vector<8x1xi1> to vector<8x128xi1>
    %157 = arith.select %156, %138, %110 : vector<8x128xi1>, vector<8x128xf32>
    %c3_i32 = arith.constant 3 : i32
    %158 = arith.index_cast %c3_i32 : i32 to index
    %c0_46 = arith.constant 0 : index
    %c0_47 = arith.constant 0 : index
    %159 = vector.load %arg9[%158, %c0_46, %c0_47] : memref<8x8x512xf32, #tpu.memory_space<vmem>>, vector<1x8x512xf32>
    %160 = vector.shape_cast %159 : vector<1x8x512xf32> to vector<8x512xf32>
    %cst_48 = arith.constant dense<0.000000e+00> : vector<8x512xf32>
    %161 = tpu.matmul %154, %13, %cst_48 {dimension_numbers = #tpu.dot_dimension_numbers<[1], [0], [0], [1], [0, 0, 1, 1], [], []>} : vector<8x128xf32>, vector<128x512xf32>, vector<8x512xf32> -> vector<8x512xf32>
    %162 = arith.addf %160, %161 : vector<8x512xf32>
    %163 = vector.extract_strided_slice %162 {offsets = [0, 0], sizes = [8, 128], strides = [1, 1]} : vector<8x512xf32> to vector<8x128xf32>
    %164 = arith.negf %163 : vector<8x128xf32>
    %165 = math.exp %164 : vector<8x128xf32>
    %cst_49 = arith.constant 1.000000e+00 : f32
    %166 = vector.broadcast %cst_49 : f32 to vector<8x128xf32>
    %167 = arith.addf %166, %165 : vector<8x128xf32>
    %168 = arith.divf %166, %167 : vector<8x128xf32>
    %169 = vector.extract_strided_slice %162 {offsets = [0, 128], sizes = [8, 128], strides = [1, 1]} : vector<8x512xf32> to vector<8x128xf32>
    %170 = arith.negf %169 : vector<8x128xf32>
    %171 = math.exp %170 : vector<8x128xf32>
    %cst_50 = arith.constant 1.000000e+00 : f32
    %172 = vector.broadcast %cst_50 : f32 to vector<8x128xf32>
    %173 = arith.addf %172, %171 : vector<8x128xf32>
    %174 = arith.divf %172, %173 : vector<8x128xf32>
    %175 = vector.extract_strided_slice %162 {offsets = [0, 256], sizes = [8, 128], strides = [1, 1]} : vector<8x512xf32> to vector<8x128xf32>
    %176 = math.tanh %175 : vector<8x128xf32>
    %177 = vector.extract_strided_slice %162 {offsets = [0, 384], sizes = [8, 128], strides = [1, 1]} : vector<8x512xf32> to vector<8x128xf32>
    %178 = arith.negf %177 : vector<8x128xf32>
    %179 = math.exp %178 : vector<8x128xf32>
    %cst_51 = arith.constant 1.000000e+00 : f32
    %180 = vector.broadcast %cst_51 : f32 to vector<8x128xf32>
    %181 = arith.addf %180, %179 : vector<8x128xf32>
    %182 = arith.divf %180, %181 : vector<8x128xf32>
    %183 = arith.mulf %174, %157 : vector<8x128xf32>
    %184 = arith.mulf %168, %176 : vector<8x128xf32>
    %185 = arith.addf %183, %184 : vector<8x128xf32>
    %186 = math.tanh %185 : vector<8x128xf32>
    %187 = arith.mulf %182, %186 : vector<8x128xf32>
    %188 = arith.addi %14, %c3_i32 : i32
    %189 = vector.broadcast %188 : i32 to vector<8x1xi32>
    %190 = arith.cmpi slt, %189, %12 : vector<8x1xi32>
    %cst_52 = arith.constant 0.000000e+00 : f32
    %191 = vector.shape_cast %190 : vector<8x1xi1> to vector<8x1xi1>
    %192 = vector.broadcast %191 : vector<8x1xi1> to vector<8x128xi1>
    %193 = vector.broadcast %cst_52 : f32 to vector<8x128xf32>
    %194 = arith.select %192, %187, %193 : vector<8x128xi1>, vector<8x128xf32>
    %195 = arith.index_cast %c3_i32 : i32 to index
    %c0_53 = arith.constant 0 : index
    %c0_54 = arith.constant 0 : index
    %196 = vector.load %arg6[%195, %c0_53, %c0_54] : memref<8x8x128xf32, #tpu.memory_space<vmem>>, vector<1x8x128xf32>
    %197 = vector.shape_cast %196 : vector<1x8x128xf32> to vector<8x128xf32>
    %198 = vector.shape_cast %194 : vector<8x128xf32> to vector<1x8x128xf32>
    tpu.vector_store %arg6[%195, %c0_53, %c0_54], %198 {strides = array<i32>} : memref<8x8x128xf32, #tpu.memory_space<vmem>>, vector<1x8x128xf32>,
    %199 = vector.shape_cast %190 : vector<8x1xi1> to vector<8x1xi1>
    %200 = vector.broadcast %199 : vector<8x1xi1> to vector<8x128xi1>
    %201 = arith.select %200, %187, %154 : vector<8x128xi1>, vector<8x128xf32>
    %202 = vector.shape_cast %190 : vector<8x1xi1> to vector<8x1xi1>
    %203 = vector.broadcast %202 : vector<8x1xi1> to vector<8x128xi1>
    %204 = arith.select %203, %185, %157 : vector<8x128xi1>, vector<8x128xf32>
    %c4_i32 = arith.constant 4 : i32
    %205 = arith.index_cast %c4_i32 : i32 to index
    %c0_55 = arith.constant 0 : index
    %c0_56 = arith.constant 0 : index
    %206 = vector.load %arg9[%205, %c0_55, %c0_56] : memref<8x8x512xf32, #tpu.memory_space<vmem>>, vector<1x8x512xf32>
    %207 = vector.shape_cast %206 : vector<1x8x512xf32> to vector<8x512xf32>
    %cst_57 = arith.constant dense<0.000000e+00> : vector<8x512xf32>
    %208 = tpu.matmul %201, %13, %cst_57 {dimension_numbers = #tpu.dot_dimension_numbers<[1], [0], [0], [1], [0, 0, 1, 1], [], []>} : vector<8x128xf32>, vector<128x512xf32>, vector<8x512xf32> -> vector<8x512xf32>
    %209 = arith.addf %207, %208 : vector<8x512xf32>
    %210 = vector.extract_strided_slice %209 {offsets = [0, 0], sizes = [8, 128], strides = [1, 1]} : vector<8x512xf32> to vector<8x128xf32>
    %211 = arith.negf %210 : vector<8x128xf32>
    %212 = math.exp %211 : vector<8x128xf32>
    %cst_58 = arith.constant 1.000000e+00 : f32
    %213 = vector.broadcast %cst_58 : f32 to vector<8x128xf32>
    %214 = arith.addf %213, %212 : vector<8x128xf32>
    %215 = arith.divf %213, %214 : vector<8x128xf32>
    %216 = vector.extract_strided_slice %209 {offsets = [0, 128], sizes = [8, 128], strides = [1, 1]} : vector<8x512xf32> to vector<8x128xf32>
    %217 = arith.negf %216 : vector<8x128xf32>
    %218 = math.exp %217 : vector<8x128xf32>
    %cst_59 = arith.constant 1.000000e+00 : f32
    %219 = vector.broadcast %cst_59 : f32 to vector<8x128xf32>
    %220 = arith.addf %219, %218 : vector<8x128xf32>
    %221 = arith.divf %219, %220 : vector<8x128xf32>
    %222 = vector.extract_strided_slice %209 {offsets = [0, 256], sizes = [8, 128], strides = [1, 1]} : vector<8x512xf32> to vector<8x128xf32>
    %223 = math.tanh %222 : vector<8x128xf32>
    %224 = vector.extract_strided_slice %209 {offsets = [0, 384], sizes = [8, 128], strides = [1, 1]} : vector<8x512xf32> to vector<8x128xf32>
    %225 = arith.negf %224 : vector<8x128xf32>
    %226 = math.exp %225 : vector<8x128xf32>
    %cst_60 = arith.constant 1.000000e+00 : f32
    %227 = vector.broadcast %cst_60 : f32 to vector<8x128xf32>
    %228 = arith.addf %227, %226 : vector<8x128xf32>
    %229 = arith.divf %227, %228 : vector<8x128xf32>
    %230 = arith.mulf %221, %204 : vector<8x128xf32>
    %231 = arith.mulf %215, %223 : vector<8x128xf32>
    %232 = arith.addf %230, %231 : vector<8x128xf32>
    %233 = math.tanh %232 : vector<8x128xf32>
    %234 = arith.mulf %229, %233 : vector<8x128xf32>
    %235 = arith.addi %14, %c4_i32 : i32
    %236 = vector.broadcast %235 : i32 to vector<8x1xi32>
    %237 = arith.cmpi slt, %236, %12 : vector<8x1xi32>
    %cst_61 = arith.constant 0.000000e+00 : f32
    %238 = vector.shape_cast %237 : vector<8x1xi1> to vector<8x1xi1>
    %239 = vector.broadcast %238 : vector<8x1xi1> to vector<8x128xi1>
    %240 = vector.broadcast %cst_61 : f32 to vector<8x128xf32>
    %241 = arith.select %239, %234, %240 : vector<8x128xi1>, vector<8x128xf32>
    %242 = arith.index_cast %c4_i32 : i32 to index
    %c0_62 = arith.constant 0 : index
    %c0_63 = arith.constant 0 : index
    %243 = vector.load %arg6[%242, %c0_62, %c0_63] : memref<8x8x128xf32, #tpu.memory_space<vmem>>, vector<1x8x128xf32>
    %244 = vector.shape_cast %243 : vector<1x8x128xf32> to vector<8x128xf32>
    %245 = vector.shape_cast %241 : vector<8x128xf32> to vector<1x8x128xf32>
    tpu.vector_store %arg6[%242, %c0_62, %c0_63], %245 {strides = array<i32>} : memref<8x8x128xf32, #tpu.memory_space<vmem>>, vector<1x8x128xf32>,
    %246 = vector.shape_cast %237 : vector<8x1xi1> to vector<8x1xi1>
    %247 = vector.broadcast %246 : vector<8x1xi1> to vector<8x128xi1>
    %248 = arith.select %247, %234, %201 : vector<8x128xi1>, vector<8x128xf32>
    %249 = vector.shape_cast %237 : vector<8x1xi1> to vector<8x1xi1>
    %250 = vector.broadcast %249 : vector<8x1xi1> to vector<8x128xi1>
    %251 = arith.select %250, %232, %204 : vector<8x128xi1>, vector<8x128xf32>
    %c5_i32 = arith.constant 5 : i32
    %252 = arith.index_cast %c5_i32 : i32 to index
    %c0_64 = arith.constant 0 : index
    %c0_65 = arith.constant 0 : index
    %253 = vector.load %arg9[%252, %c0_64, %c0_65] : memref<8x8x512xf32, #tpu.memory_space<vmem>>, vector<1x8x512xf32>
    %254 = vector.shape_cast %253 : vector<1x8x512xf32> to vector<8x512xf32>
    %cst_66 = arith.constant dense<0.000000e+00> : vector<8x512xf32>
    %255 = tpu.matmul %248, %13, %cst_66 {dimension_numbers = #tpu.dot_dimension_numbers<[1], [0], [0], [1], [0, 0, 1, 1], [], []>} : vector<8x128xf32>, vector<128x512xf32>, vector<8x512xf32> -> vector<8x512xf32>
    %256 = arith.addf %254, %255 : vector<8x512xf32>
    %257 = vector.extract_strided_slice %256 {offsets = [0, 0], sizes = [8, 128], strides = [1, 1]} : vector<8x512xf32> to vector<8x128xf32>
    %258 = arith.negf %257 : vector<8x128xf32>
    %259 = math.exp %258 : vector<8x128xf32>
    %cst_67 = arith.constant 1.000000e+00 : f32
    %260 = vector.broadcast %cst_67 : f32 to vector<8x128xf32>
    %261 = arith.addf %260, %259 : vector<8x128xf32>
    %262 = arith.divf %260, %261 : vector<8x128xf32>
    %263 = vector.extract_strided_slice %256 {offsets = [0, 128], sizes = [8, 128], strides = [1, 1]} : vector<8x512xf32> to vector<8x128xf32>
    %264 = arith.negf %263 : vector<8x128xf32>
    %265 = math.exp %264 : vector<8x128xf32>
    %cst_68 = arith.constant 1.000000e+00 : f32
    %266 = vector.broadcast %cst_68 : f32 to vector<8x128xf32>
    %267 = arith.addf %266, %265 : vector<8x128xf32>
    %268 = arith.divf %266, %267 : vector<8x128xf32>
    %269 = vector.extract_strided_slice %256 {offsets = [0, 256], sizes = [8, 128], strides = [1, 1]} : vector<8x512xf32> to vector<8x128xf32>
    %270 = math.tanh %269 : vector<8x128xf32>
    %271 = vector.extract_strided_slice %256 {offsets = [0, 384], sizes = [8, 128], strides = [1, 1]} : vector<8x512xf32> to vector<8x128xf32>
    %272 = arith.negf %271 : vector<8x128xf32>
    %273 = math.exp %272 : vector<8x128xf32>
    %cst_69 = arith.constant 1.000000e+00 : f32
    %274 = vector.broadcast %cst_69 : f32 to vector<8x128xf32>
    %275 = arith.addf %274, %273 : vector<8x128xf32>
    %276 = arith.divf %274, %275 : vector<8x128xf32>
    %277 = arith.mulf %268, %251 : vector<8x128xf32>
    %278 = arith.mulf %262, %270 : vector<8x128xf32>
    %279 = arith.addf %277, %278 : vector<8x128xf32>
    %280 = math.tanh %279 : vector<8x128xf32>
    %281 = arith.mulf %276, %280 : vector<8x128xf32>
    %282 = arith.addi %14, %c5_i32 : i32
    %283 = vector.broadcast %282 : i32 to vector<8x1xi32>
    %284 = arith.cmpi slt, %283, %12 : vector<8x1xi32>
    %cst_70 = arith.constant 0.000000e+00 : f32
    %285 = vector.shape_cast %284 : vector<8x1xi1> to vector<8x1xi1>
    %286 = vector.broadcast %285 : vector<8x1xi1> to vector<8x128xi1>
    %287 = vector.broadcast %cst_70 : f32 to vector<8x128xf32>
    %288 = arith.select %286, %281, %287 : vector<8x128xi1>, vector<8x128xf32>
    %289 = arith.index_cast %c5_i32 : i32 to index
    %c0_71 = arith.constant 0 : index
    %c0_72 = arith.constant 0 : index
    %290 = vector.load %arg6[%289, %c0_71, %c0_72] : memref<8x8x128xf32, #tpu.memory_space<vmem>>, vector<1x8x128xf32>
    %291 = vector.shape_cast %290 : vector<1x8x128xf32> to vector<8x128xf32>
    %292 = vector.shape_cast %288 : vector<8x128xf32> to vector<1x8x128xf32>
    tpu.vector_store %arg6[%289, %c0_71, %c0_72], %292 {strides = array<i32>} : memref<8x8x128xf32, #tpu.memory_space<vmem>>, vector<1x8x128xf32>,
    %293 = vector.shape_cast %284 : vector<8x1xi1> to vector<8x1xi1>
    %294 = vector.broadcast %293 : vector<8x1xi1> to vector<8x128xi1>
    %295 = arith.select %294, %281, %248 : vector<8x128xi1>, vector<8x128xf32>
    %296 = vector.shape_cast %284 : vector<8x1xi1> to vector<8x1xi1>
    %297 = vector.broadcast %296 : vector<8x1xi1> to vector<8x128xi1>
    %298 = arith.select %297, %279, %251 : vector<8x128xi1>, vector<8x128xf32>
    %c6_i32 = arith.constant 6 : i32
    %299 = arith.index_cast %c6_i32 : i32 to index
    %c0_73 = arith.constant 0 : index
    %c0_74 = arith.constant 0 : index
    %300 = vector.load %arg9[%299, %c0_73, %c0_74] : memref<8x8x512xf32, #tpu.memory_space<vmem>>, vector<1x8x512xf32>
    %301 = vector.shape_cast %300 : vector<1x8x512xf32> to vector<8x512xf32>
    %cst_75 = arith.constant dense<0.000000e+00> : vector<8x512xf32>
    %302 = tpu.matmul %295, %13, %cst_75 {dimension_numbers = #tpu.dot_dimension_numbers<[1], [0], [0], [1], [0, 0, 1, 1], [], []>} : vector<8x128xf32>, vector<128x512xf32>, vector<8x512xf32> -> vector<8x512xf32>
    %303 = arith.addf %301, %302 : vector<8x512xf32>
    %304 = vector.extract_strided_slice %303 {offsets = [0, 0], sizes = [8, 128], strides = [1, 1]} : vector<8x512xf32> to vector<8x128xf32>
    %305 = arith.negf %304 : vector<8x128xf32>
    %306 = math.exp %305 : vector<8x128xf32>
    %cst_76 = arith.constant 1.000000e+00 : f32
    %307 = vector.broadcast %cst_76 : f32 to vector<8x128xf32>
    %308 = arith.addf %307, %306 : vector<8x128xf32>
    %309 = arith.divf %307, %308 : vector<8x128xf32>
    %310 = vector.extract_strided_slice %303 {offsets = [0, 128], sizes = [8, 128], strides = [1, 1]} : vector<8x512xf32> to vector<8x128xf32>
    %311 = arith.negf %310 : vector<8x128xf32>
    %312 = math.exp %311 : vector<8x128xf32>
    %cst_77 = arith.constant 1.000000e+00 : f32
    %313 = vector.broadcast %cst_77 : f32 to vector<8x128xf32>
    %314 = arith.addf %313, %312 : vector<8x128xf32>
    %315 = arith.divf %313, %314 : vector<8x128xf32>
    %316 = vector.extract_strided_slice %303 {offsets = [0, 256], sizes = [8, 128], strides = [1, 1]} : vector<8x512xf32> to vector<8x128xf32>
    %317 = math.tanh %316 : vector<8x128xf32>
    %318 = vector.extract_strided_slice %303 {offsets = [0, 384], sizes = [8, 128], strides = [1, 1]} : vector<8x512xf32> to vector<8x128xf32>
    %319 = arith.negf %318 : vector<8x128xf32>
    %320 = math.exp %319 : vector<8x128xf32>
    %cst_78 = arith.constant 1.000000e+00 : f32
    %321 = vector.broadcast %cst_78 : f32 to vector<8x128xf32>
    %322 = arith.addf %321, %320 : vector<8x128xf32>
    %323 = arith.divf %321, %322 : vector<8x128xf32>
    %324 = arith.mulf %315, %298 : vector<8x128xf32>
    %325 = arith.mulf %309, %317 : vector<8x128xf32>
    %326 = arith.addf %324, %325 : vector<8x128xf32>
    %327 = math.tanh %326 : vector<8x128xf32>
    %328 = arith.mulf %323, %327 : vector<8x128xf32>
    %329 = arith.addi %14, %c6_i32 : i32
    %330 = vector.broadcast %329 : i32 to vector<8x1xi32>
    %331 = arith.cmpi slt, %330, %12 : vector<8x1xi32>
    %cst_79 = arith.constant 0.000000e+00 : f32
    %332 = vector.shape_cast %331 : vector<8x1xi1> to vector<8x1xi1>
    %333 = vector.broadcast %332 : vector<8x1xi1> to vector<8x128xi1>
    %334 = vector.broadcast %cst_79 : f32 to vector<8x128xf32>
    %335 = arith.select %333, %328, %334 : vector<8x128xi1>, vector<8x128xf32>
    %336 = arith.index_cast %c6_i32 : i32 to index
    %c0_80 = arith.constant 0 : index
    %c0_81 = arith.constant 0 : index
    %337 = vector.load %arg6[%336, %c0_80, %c0_81] : memref<8x8x128xf32, #tpu.memory_space<vmem>>, vector<1x8x128xf32>
    %338 = vector.shape_cast %337 : vector<1x8x128xf32> to vector<8x128xf32>
    %339 = vector.shape_cast %335 : vector<8x128xf32> to vector<1x8x128xf32>
    tpu.vector_store %arg6[%336, %c0_80, %c0_81], %339 {strides = array<i32>} : memref<8x8x128xf32, #tpu.memory_space<vmem>>, vector<1x8x128xf32>,
    %340 = vector.shape_cast %331 : vector<8x1xi1> to vector<8x1xi1>
    %341 = vector.broadcast %340 : vector<8x1xi1> to vector<8x128xi1>
    %342 = arith.select %341, %328, %295 : vector<8x128xi1>, vector<8x128xf32>
    %343 = vector.shape_cast %331 : vector<8x1xi1> to vector<8x1xi1>
    %344 = vector.broadcast %343 : vector<8x1xi1> to vector<8x128xi1>
    %345 = arith.select %344, %326, %298 : vector<8x128xi1>, vector<8x128xf32>
    %c7_i32 = arith.constant 7 : i32
    %346 = arith.index_cast %c7_i32 : i32 to index
    %c0_82 = arith.constant 0 : index
    %c0_83 = arith.constant 0 : index
    %347 = vector.load %arg9[%346, %c0_82, %c0_83] : memref<8x8x512xf32, #tpu.memory_space<vmem>>, vector<1x8x512xf32>
    %348 = vector.shape_cast %347 : vector<1x8x512xf32> to vector<8x512xf32>
    %cst_84 = arith.constant dense<0.000000e+00> : vector<8x512xf32>
    %349 = tpu.matmul %342, %13, %cst_84 {dimension_numbers = #tpu.dot_dimension_numbers<[1], [0], [0], [1], [0, 0, 1, 1], [], []>} : vector<8x128xf32>, vector<128x512xf32>, vector<8x512xf32> -> vector<8x512xf32>
    %350 = arith.addf %348, %349 : vector<8x512xf32>
    %351 = vector.extract_strided_slice %350 {offsets = [0, 0], sizes = [8, 128], strides = [1, 1]} : vector<8x512xf32> to vector<8x128xf32>
    %352 = arith.negf %351 : vector<8x128xf32>
    %353 = math.exp %352 : vector<8x128xf32>
    %cst_85 = arith.constant 1.000000e+00 : f32
    %354 = vector.broadcast %cst_85 : f32 to vector<8x128xf32>
    %355 = arith.addf %354, %353 : vector<8x128xf32>
    %356 = arith.divf %354, %355 : vector<8x128xf32>
    %357 = vector.extract_strided_slice %350 {offsets = [0, 128], sizes = [8, 128], strides = [1, 1]} : vector<8x512xf32> to vector<8x128xf32>
    %358 = arith.negf %357 : vector<8x128xf32>
    %359 = math.exp %358 : vector<8x128xf32>
    %cst_86 = arith.constant 1.000000e+00 : f32
    %360 = vector.broadcast %cst_86 : f32 to vector<8x128xf32>
    %361 = arith.addf %360, %359 : vector<8x128xf32>
    %362 = arith.divf %360, %361 : vector<8x128xf32>
    %363 = vector.extract_strided_slice %350 {offsets = [0, 256], sizes = [8, 128], strides = [1, 1]} : vector<8x512xf32> to vector<8x128xf32>
    %364 = math.tanh %363 : vector<8x128xf32>
    %365 = vector.extract_strided_slice %350 {offsets = [0, 384], sizes = [8, 128], strides = [1, 1]} : vector<8x512xf32> to vector<8x128xf32>
    %366 = arith.negf %365 : vector<8x128xf32>
    %367 = math.exp %366 : vector<8x128xf32>
    %cst_87 = arith.constant 1.000000e+00 : f32
    %368 = vector.broadcast %cst_87 : f32 to vector<8x128xf32>
    %369 = arith.addf %368, %367 : vector<8x128xf32>
    %370 = arith.divf %368, %369 : vector<8x128xf32>
    %371 = arith.mulf %362, %345 : vector<8x128xf32>
    %372 = arith.mulf %356, %364 : vector<8x128xf32>
    %373 = arith.addf %371, %372 : vector<8x128xf32>
    %374 = math.tanh %373 : vector<8x128xf32>
    %375 = arith.mulf %370, %374 : vector<8x128xf32>
    %376 = arith.addi %14, %c7_i32 : i32
    %377 = vector.broadcast %376 : i32 to vector<8x1xi32>
    %378 = arith.cmpi slt, %377, %12 : vector<8x1xi32>
    %cst_88 = arith.constant 0.000000e+00 : f32
    %379 = vector.shape_cast %378 : vector<8x1xi1> to vector<8x1xi1>
    %380 = vector.broadcast %379 : vector<8x1xi1> to vector<8x128xi1>
    %381 = vector.broadcast %cst_88 : f32 to vector<8x128xf32>
    %382 = arith.select %380, %375, %381 : vector<8x128xi1>, vector<8x128xf32>
    %383 = arith.index_cast %c7_i32 : i32 to index
    %c0_89 = arith.constant 0 : index
    %c0_90 = arith.constant 0 : index
    %384 = vector.load %arg6[%383, %c0_89, %c0_90] : memref<8x8x128xf32, #tpu.memory_space<vmem>>, vector<1x8x128xf32>
    %385 = vector.shape_cast %384 : vector<1x8x128xf32> to vector<8x128xf32>
    %386 = vector.shape_cast %382 : vector<8x128xf32> to vector<1x8x128xf32>
    tpu.vector_store %arg6[%383, %c0_89, %c0_90], %386 {strides = array<i32>} : memref<8x8x128xf32, #tpu.memory_space<vmem>>, vector<1x8x128xf32>,
    %387 = vector.shape_cast %378 : vector<8x1xi1> to vector<8x1xi1>
    %388 = vector.broadcast %387 : vector<8x1xi1> to vector<8x128xi1>
    %389 = arith.select %388, %375, %342 : vector<8x128xi1>, vector<8x128xf32>
    %390 = vector.shape_cast %378 : vector<8x1xi1> to vector<8x1xi1>
    %391 = vector.broadcast %390 : vector<8x1xi1> to vector<8x128xi1>
    %392 = arith.select %391, %373, %345 : vector<8x128xi1>, vector<8x128xf32>
    %c8_i32_91 = arith.constant 8 : i32
    %c0_92 = arith.constant 0 : index
    %c0_93 = arith.constant 0 : index
    %393 = vector.load %arg7[%c0_92, %c0_93] : memref<8x128xf32, #tpu.memory_space<vmem>>, vector<8x128xf32>
    tpu.vector_store %arg7[%c0_92, %c0_93], %389 {strides = array<i32>} : memref<8x128xf32, #tpu.memory_space<vmem>>, vector<8x128xf32>,
    %c0_94 = arith.constant 0 : index
    %c0_95 = arith.constant 0 : index
    %394 = vector.load %arg8[%c0_94, %c0_95] : memref<8x128xf32, #tpu.memory_space<vmem>>, vector<8x128xf32>
    tpu.vector_store %arg8[%c0_94, %c0_95], %392 {strides = array<i32>} : memref<8x128xf32, #tpu.memory_space<vmem>>, vector<8x128xf32>,
    return
  }
  func.func @transform_0(%arg0: i32) -> (i32, i32, i32) {
    %c0_i32 = arith.constant 0 : i32
    %c0_i32_0 = arith.constant 0 : i32
    %c0_i32_1 = arith.constant 0 : i32
    return %arg0, %c0_i32, %c0_i32_0 : i32, i32, i32
  }
  func.func @transform_1(%arg0: i32) -> (i32, i32) {
    %c0_i32 = arith.constant 0 : i32
    %c0_i32_0 = arith.constant 0 : i32
    %c0_i32_1 = arith.constant 0 : i32
    return %c0_i32, %c0_i32_0 : i32, i32
  }
  func.func @transform_2(%arg0: i32) -> (i32, i32) {
    %c0_i32 = arith.constant 0 : i32
    %c0_i32_0 = arith.constant 0 : i32
    %c0_i32_1 = arith.constant 0 : i32
    return %c0_i32, %c0_i32_0 : i32, i32
  }
  func.func @transform_3(%arg0: i32) -> (i32, i32) {
    %c0_i32 = arith.constant 0 : i32
    %c0_i32_0 = arith.constant 0 : i32
    %c0_i32_1 = arith.constant 0 : i32
    return %c0_i32, %c0_i32_0 : i32, i32
  }
  func.func @transform_4(%arg0: i32) -> (i32, i32) {
    %c0_i32 = arith.constant 0 : i32
    %c0_i32_0 = arith.constant 0 : i32
    %c0_i32_1 = arith.constant 0 : i32
    return %c0_i32, %c0_i32_0 : i32, i32
  }
  func.func @transform_5(%arg0: i32) -> (i32, i32, i32) {
    %c0_i32 = arith.constant 0 : i32
    %c0_i32_0 = arith.constant 0 : i32
    %c0_i32_1 = arith.constant 0 : i32
    return %arg0, %c0_i32, %c0_i32_0 : i32, i32, i32
  }
}

</mosaic_0001>

<llo_original>
// kernel: tpu_custom_call.1
$region0: #{tpu_custom_call.1}
  #allocation0 [shape = 'u32[]', space=smem, size = 0x4, offset = 0x4, fixed_abs, tag = 'smem constant byte address 0x4 - core index']
  #allocation1 [shape = 'u32[72,128]{1,0:T(1,128)}', space=vmem, size = 0x9000, scoped, tag = 'internal scratch']
  #allocation2 [shape = 'f32[8,128]{1,0:T(8,128)}', space=vmem, size = 0x1000, scoped, tag = 'scratch operand']
  #allocation3 [shape = 'f32[8,128]{1,0:T(8,128)}', space=vmem, size = 0x1000, scoped, tag = 'scratch operand']
  #allocation4 [shape = 'f32[8,8,512]{2,1,0:T(8,128)}', space=vmem, size = 0x20000, scoped, tag = 'scratch operand']
  %s0 = inlined_call_operand.hbm [shape: f32[8,8,32], index: 0, kind: input, shape index: {}]
  %s1 = inlined_call_operand.vmem [shape: s32[8,1], index: 1, kind: input, shape index: {}]
  %s2 = inlined_call_operand.hbm [shape: f32[32,512], index: 2, kind: input, shape index: {}]
  %s3 = inlined_call_operand.hbm [shape: f32[128,512], index: 3, kind: input, shape index: {}]
  %s4 = inlined_call_operand.vmem [shape: f32[1,512], index: 4, kind: input, shape index: {}]
  %s5 = inlined_call_operand.hbm [shape: f32[8,8,128], index: 5, kind: output, shape index: {}]
  %s6 = sld [smem:[#allocation0]]
  $region46: #{tpu_custom_call.1} parent=0
    _
  %s8 = ssub.s32 1, %s6
  %s9 = scalar_select 0, %s8, %s6
  $region1: #{tpu_custom_call.1} parent=0
    #allocation5 [shape = 'u8[32768]{0}', space=vmem, size = 0x8000, scoped, tag = 'input window, operand 0, single buffered']
    #allocation6 [shape = 's32[1]{0}', space=sflag, size = 0x4, scoped, tag = 'scoped memory for tpu_custom_call.1']
    #allocation7 [shape = 's32[1]{0}', space=sflag, size = 0x4, scoped, tag = 'scoped memory for tpu_custom_call.1']
    #allocation8 [shape = 'u8[65536]{0}', space=vmem, size = 0x10000, scoped, tag = 'input window, operand 2, single buffered']
    #allocation9 [shape = 's32[1]{0}', space=sflag, size = 0x4, scoped, tag = 'scoped memory for tpu_custom_call.1']
    #allocation10 [shape = 'u8[262144]{0}', space=vmem, size = 0x40000, scoped, tag = 'input window, operand 3, single buffered']
    #allocation11 [shape = 'u8[32768]{0}', space=vmem, size = 0x8000, scoped, tag = 'output window, operand 0, single buffered']
    %10 = vsyncpa [#allocation6], 0
    %11 = vsyncpa [#allocation9], 0
    %12 = vsyncpa [#allocation7], 0
    // Predicated region
    $region2: #{tpu_custom_call.1} parent=1 // pred_check
      _
    $region3: #{tpu_custom_call.1} parent=1 // pred_check_branch
      %14 = sbr.rel (0) target = $region5
    $region4: #{tpu_custom_call.1} parent=1 // pred_region
      %16 = vsyncadd [#allocation6], 0
      %s17 = sshll.u32 %s0, 4
      %s18 = int_to_ptr.hbm [resolvable:$true] %s17
      %s19 = sshll.u32 [#allocation5], 4
      %s20 = int_to_ptr.vmem [resolvable:$true] %s19
      %25 = dma.hbm_to_vmem [thread:$0]  %s18, 1024, %s20, [#allocation6], 128, 128, 8
    $region5: #{tpu_custom_call.1} parent=1 // pred_fallthru
      _
    // Predicated region
    $region6: #{tpu_custom_call.1} parent=1 // pred_check
      _
    $region7: #{tpu_custom_call.1} parent=1 // pred_check_branch
      %27 = sbr.rel (0) target = $region9
    $region8: #{tpu_custom_call.1} parent=1 // pred_region
      _
    $region9: #{tpu_custom_call.1} parent=1 // pred_fallthru
      _
    // Predicated region
    $region10: #{tpu_custom_call.1} parent=1 // pred_check
      _
    $region11: #{tpu_custom_call.1} parent=1 // pred_check_branch
      %29 = sbr.rel (0) target = $region13
    $region12: #{tpu_custom_call.1} parent=1 // pred_region
      %31 = vsyncadd [#allocation9], 0
      %s32 = sshll.u32 %s2, 4
      %s33 = int_to_ptr.hbm [resolvable:$true] %s32
      %s34 = sshll.u32 [#allocation8], 4
      %s35 = int_to_ptr.vmem [resolvable:$true] %s34
      %40 = dma.hbm_to_vmem [thread:$0]  %s33, 2048, %s35, [#allocation9], 512, 512, 32
    $region13: #{tpu_custom_call.1} parent=1 // pred_fallthru
      _
    // Predicated region
    $region14: #{tpu_custom_call.1} parent=1 // pred_check
      _
    $region15: #{tpu_custom_call.1} parent=1 // pred_check_branch
      %42 = sbr.rel (0) target = $region17
    $region16: #{tpu_custom_call.1} parent=1 // pred_region
      %44 = vsyncadd [#allocation9], 0
      %s45 = sshll.u32 %s3, 4
      %s46 = int_to_ptr.hbm [resolvable:$true] %s45
      %s47 = sshll.u32 [#allocation10], 4
      %s48 = int_to_ptr.vmem [resolvable:$true] %s47
      %53 = dma.hbm_to_vmem [thread:$0]  %s46, 8192, %s48, [#allocation9], 512, 512, 32
    $region17: #{tpu_custom_call.1} parent=1 // pred_fallthru
      _
    // Predicated region
    $region18: #{tpu_custom_call.1} parent=1 // pred_check
      _
    $region19: #{tpu_custom_call.1} parent=1 // pred_check_branch
      %55 = sbr.rel (0) target = $region21
    $region20: #{tpu_custom_call.1} parent=1 // pred_region
      _
    $region21: #{tpu_custom_call.1} parent=1 // pred_fallthru
      _
    // Predicated region
    $region22: #{tpu_custom_call.1} parent=1 // pred_check
      _
    $region23: #{tpu_custom_call.1} parent=1 // pred_check_branch
      %57 = sbr.rel (0) target = $region25
    $region24: #{tpu_custom_call.1} parent=1 // pred_region
      %59 = dma.done [#allocation6], 1024
    $region25: #{tpu_custom_call.1} parent=1 // pred_fallthru
      _
    // Predicated region
    $region26: #{tpu_custom_call.1} parent=1 // pred_check
      _
    $region27: #{tpu_custom_call.1} parent=1 // pred_check_branch
      %61 = sbr.rel (0) target = $region29
    $region28: #{tpu_custom_call.1} parent=1 // pred_region
      %63 = dma.done [#allocation9], 2048
    $region29: #{tpu_custom_call.1} parent=1 // pred_fallthru
      _
    // Predicated region
    $region30: #{tpu_custom_call.1} parent=1 // pred_check
      _
    $region31: #{tpu_custom_call.1} parent=1 // pred_check_branch
      %65 = sbr.rel (0) target = $region33
    $region32: #{tpu_custom_call.1} parent=1 // pred_region
      %67 = dma.done [#allocation9], 8192
    $region33: #{tpu_custom_call.1} parent=1 // pred_fallthru
      _
    %p68 = scmp.eq.s32.totalorder 0, 0
    // Predicated region
    $region34: #{tpu_custom_call.1} parent=1 // pred_check
      %p69 = pneg %p68
    $region35: #{tpu_custom_call.1} parent=1 // pred_check_branch
      %71 = sbr.rel (%p69) target = $region37
    $region36: #{tpu_custom_call.1} parent=1 // pred_region
      %72 = vst [vmem:[#allocation2] sm:$0xff] 0.0
      %73 = vst [vmem:[#allocation3] sm:$0xff] 0.0
    $region37: #{tpu_custom_call.1} parent=1 // pred_fallthru
      _
    %v74 = vld [vmem:[#allocation5] sm:$0xff]
    %v75 = vld [vmem:[#allocation5 + $0x8] sm:$0xff]
    %v76 = vld [vmem:[#allocation5 + $0x10] sm:$0xff]
    %v77 = vld [vmem:[#allocation5 + $0x18] sm:$0xff]
    %v78 = vld [vmem:[#allocation5 + $0x20] sm:$0xff]
    %v79 = vld [vmem:[#allocation5 + $0x28] sm:$0xff]
    %v80 = vld [vmem:[#allocation5 + $0x30] sm:$0xff]
    %v81 = vld [vmem:[#allocation5 + $0x38] sm:$0xff]
    %v82 = vld [vmem:[#allocation8] sm:$0xff]
    %v83 = vld [vmem:[#allocation8 + $0x8] sm:$0xff]
    %v84 = vld [vmem:[#allocation8 + $0x10] sm:$0xff]
    %v85 = vld [vmem:[#allocation8 + $0x18] sm:$0xff]
    %v86 = vld [vmem:[#allocation8 + $0x20] sm:$0xff]
    %v87 = vld [vmem:[#allocation8 + $0x28] sm:$0xff]
    %v88 = vld [vmem:[#allocation8 + $0x30] sm:$0xff]
    %v89 = vld [vmem:[#allocation8 + $0x38] sm:$0xff]
    %v90 = vld [vmem:[#allocation8 + $0x40] sm:$0xff]
    %v91 = vld [vmem:[#allocation8 + $0x48] sm:$0xff]
    %v92 = vld [vmem:[#allocation8 + $0x50] sm:$0xff]
    %v93 = vld [vmem:[#allocation8 + $0x58] sm:$0xff]
    %v94 = vld [vmem:[#allocation8 + $0x60] sm:$0xff]
    %v95 = vld [vmem:[#allocation8 + $0x68] sm:$0xff]
    %v96 = vld [vmem:[#allocation8 + $0x70] sm:$0xff]
    %v97 = vld [vmem:[#allocation8 + $0x78] sm:$0xff]
    %v98 = vld [vmem:[%s4] sm:$0xf]
    %v100 = vperm.slane %v98, 0
    %v101 = vperm.slane %v98, 1
    %v102 = vperm.slane %v98, 2
    %v103 = vperm.slane %v98, 3
    %vm108 = vcmask 261120
    %v110 = vsel %vm108, %v74, 0
    %v113 = vsel %vm108, %v75, 0
    %v116 = vsel %vm108, %v76, 0
    %v119 = vsel %vm108, %v77, 0
    %v122 = vsel %vm108, %v78, 0
    %v125 = vsel %vm108, %v79, 0
    %v128 = vsel %vm108, %v80, 0
    %v131 = vsel %vm108, %v81, 0
    %133 = vmatpush.msra.mxu0 0.0
    %134 = vmatpush.msra.mxu0 0.0
    %135 = vmatpush.msra.mxu0 0.0
    %136 = vmatpush.msra.mxu0 0.0
    %137 = vmatpush.msra.mxu0 0.0
    %138 = vmatpush.msra.mxu0 0.0
    %139 = vmatpush.msra.mxu0 0.0
    %140 = vmatpush.msra.mxu0 0.0
    %141 = vmatpush.msra.mxu0 0.0
    %142 = vmatpush.msra.mxu0 0.0
    %143 = vmatpush.msra.mxu0 0.0
    %144 = vmatpush.msra.mxu0 0.0
    %145 = vmatpush.msra.mxu0 %v94
    %146 = vmatpush.msra.mxu0 %v90
    %147 = vmatpush.msra.mxu0 %v86
    %148 = vmatpush.msra.mxu0 %v82
    %149 = vmatmul.f32.gmra.mxu0 %v110
    %v150 = vpop.f32.mrf.mxu0
    %v151 = vadd.f32 %v100, %v150
    %152 = vmatmul.f32.gmra.mxu0 %v113
    %v153 = vpop.f32.mrf.mxu0
    %v154 = vadd.f32 %v100, %v153
    %155 = vmatmul.f32.gmra.mxu0 %v116
    %v156 = vpop.f32.mrf.mxu0
    %v157 = vadd.f32 %v100, %v156
    %158 = vmatmul.f32.gmra.mxu0 %v119
    %v159 = vpop.f32.mrf.mxu0
    %v160 = vadd.f32 %v100, %v159
    %161 = vmatmul.f32.gmra.mxu0 %v122
    %v162 = vpop.f32.mrf.mxu0
    %v163 = vadd.f32 %v100, %v162
    %164 = vmatmul.f32.gmra.mxu0 %v125
    %v165 = vpop.f32.mrf.mxu0
    %v166 = vadd.f32 %v100, %v165
    %167 = vmatmul.f32.gmra.mxu0 %v128
    %v168 = vpop.f32.mrf.mxu0
    %v169 = vadd.f32 %v100, %v168
    %170 = vmatmul.f32.gmra.mxu0 %v131
    %v171 = vpop.f32.mrf.mxu0
    %v172 = vadd.f32 %v100, %v171
    %173 = vdwg.mxu0
    %174 = vmatpush.msra.mxu0 0.0
    %175 = vmatpush.msra.mxu0 0.0
    %176 = vmatpush.msra.mxu0 0.0
    %177 = vmatpush.msra.mxu0 0.0
    %178 = vmatpush.msra.mxu0 0.0
    %179 = vmatpush.msra.mxu0 0.0
    %180 = vmatpush.msra.mxu0 0.0
    %181 = vmatpush.msra.mxu0 0.0
    %182 = vmatpush.msra.mxu0 0.0
    %183 = vmatpush.msra.mxu0 0.0
    %184 = vmatpush.msra.mxu0 0.0
    %185 = vmatpush.msra.mxu0 0.0
    %186 = vmatpush.msra.mxu0 %v95
    %187 = vmatpush.msra.mxu0 %v91
    %188 = vmatpush.msra.mxu0 %v87
    %189 = vmatpush.msra.mxu0 %v83
    %190 = vmatmul.f32.gmra.mxu0 %v110
    %v191 = vpop.f32.mrf.mxu0
    %v192 = vadd.f32 %v101, %v191
    %193 = vmatmul.f32.gmra.mxu0 %v113
    %v194 = vpop.f32.mrf.mxu0
    %v195 = vadd.f32 %v101, %v194
    %196 = vmatmul.f32.gmra.mxu0 %v116
    %v197 = vpop.f32.mrf.mxu0
    %v198 = vadd.f32 %v101, %v197
    %199 = vmatmul.f32.gmra.mxu0 %v119
    %v200 = vpop.f32.mrf.mxu0
    %v201 = vadd.f32 %v101, %v200
    %202 = vmatmul.f32.gmra.mxu0 %v122
    %v203 = vpop.f32.mrf.mxu0
    %v204 = vadd.f32 %v101, %v203
    %205 = vmatmul.f32.gmra.mxu0 %v125
    %v206 = vpop.f32.mrf.mxu0
    %v207 = vadd.f32 %v101, %v206
    %208 = vmatmul.f32.gmra.mxu0 %v128
    %v209 = vpop.f32.mrf.mxu0
    %v210 = vadd.f32 %v101, %v209
    %211 = vmatmul.f32.gmra.mxu0 %v131
    %v212 = vpop.f32.mrf.mxu0
    %v213 = vadd.f32 %v101, %v212
    %214 = vdwg.mxu0
    %215 = vmatpush.msra.mxu0 0.0
    %216 = vmatpush.msra.mxu0 0.0
    %217 = vmatpush.msra.mxu0 0.0
    %218 = vmatpush.msra.mxu0 0.0
    %219 = vmatpush.msra.mxu0 0.0
    %220 = vmatpush.msra.mxu0 0.0
    %221 = vmatpush.msra.mxu0 0.0
    %222 = vmatpush.msra.mxu0 0.0
    %223 = vmatpush.msra.mxu0 0.0
    %224 = vmatpush.msra.mxu0 0.0
    %225 = vmatpush.msra.mxu0 0.0
    %226 = vmatpush.msra.mxu0 0.0
    %227 = vmatpush.msra.mxu0 %v96
    %228 = vmatpush.msra.mxu0 %v92
    %229 = vmatpush.msra.mxu0 %v88
    %230 = vmatpush.msra.mxu0 %v84
    %231 = vmatmul.f32.gmra.mxu0 %v110
    %v232 = vpop.f32.mrf.mxu0
    %v233 = vadd.f32 %v102, %v232
    %234 = vmatmul.f32.gmra.mxu0 %v113
    %v235 = vpop.f32.mrf.mxu0
    %v236 = vadd.f32 %v102, %v235
    %237 = vmatmul.f32.gmra.mxu0 %v116
    %v238 = vpop.f32.mrf.mxu0
    %v239 = vadd.f32 %v102, %v238
    %240 = vmatmul.f32.gmra.mxu0 %v119
    %v241 = vpop.f32.mrf.mxu0
    %v242 = vadd.f32 %v102, %v241
    %243 = vmatmul.f32.gmra.mxu0 %v122
    %v244 = vpop.f32.mrf.mxu0
    %v245 = vadd.f32 %v102, %v244
    %246 = vmatmul.f32.gmra.mxu0 %v125
    %v247 = vpop.f32.mrf.mxu0
    %v248 = vadd.f32 %v102, %v247
    %249 = vmatmul.f32.gmra.mxu0 %v128
    %v250 = vpop.f32.mrf.mxu0
    %v251 = vadd.f32 %v102, %v250
    %252 = vmatmul.f32.gmra.mxu0 %v131
    %v253 = vpop.f32.mrf.mxu0
    %v254 = vadd.f32 %v102, %v253
    %255 = vdwg.mxu0
    %256 = vmatpush.msra.mxu0 0.0
    %257 = vmatpush.msra.mxu0 0.0
    %258 = vmatpush.msra.mxu0 0.0
    %259 = vmatpush.msra.mxu0 0.0
    %260 = vmatpush.msra.mxu0 0.0
    %261 = vmatpush.msra.mxu0 0.0
    %262 = vmatpush.msra.mxu0 0.0
    %263 = vmatpush.msra.mxu0 0.0
    %264 = vmatpush.msra.mxu0 0.0
    %265 = vmatpush.msra.mxu0 0.0
    %266 = vmatpush.msra.mxu0 0.0
    %267 = vmatpush.msra.mxu0 0.0
    %268 = vmatpush.msra.mxu0 %v97
    %269 = vmatpush.msra.mxu0 %v93
    %270 = vmatpush.msra.mxu0 %v89
    %271 = vmatpush.msra.mxu0 %v85
    %272 = vmatmul.f32.gmra.mxu0 %v110
    %v273 = vpop.f32.mrf.mxu0
    %v274 = vadd.f32 %v103, %v273
    %275 = vmatmul.f32.gmra.mxu0 %v113
    %v276 = vpop.f32.mrf.mxu0
    %v277 = vadd.f32 %v103, %v276
    %278 = vmatmul.f32.gmra.mxu0 %v116
    %v279 = vpop.f32.mrf.mxu0
    %v280 = vadd.f32 %v103, %v279
    %281 = vmatmul.f32.gmra.mxu0 %v119
    %v282 = vpop.f32.mrf.mxu0
    %v283 = vadd.f32 %v103, %v282
    %284 = vmatmul.f32.gmra.mxu0 %v122
    %v285 = vpop.f32.mrf.mxu0
    %v286 = vadd.f32 %v103, %v285
    %287 = vmatmul.f32.gmra.mxu0 %v125
    %v288 = vpop.f32.mrf.mxu0
    %v289 = vadd.f32 %v103, %v288
    %290 = vmatmul.f32.gmra.mxu0 %v128
    %v291 = vpop.f32.mrf.mxu0
    %v292 = vadd.f32 %v103, %v291
    %293 = vmatmul.f32.gmra.mxu0 %v131
    %v294 = vpop.f32.mrf.mxu0
    %v295 = vadd.f32 %v103, %v294
    %296 = vdwg.mxu0
    %297 = vst [vmem:[#allocation4] sm:$0xff] %v151
    %298 = vst [vmem:[#allocation4 + $0x8] sm:$0xff] %v192
    %299 = vst [vmem:[#allocation4 + $0x10] sm:$0xff] %v233
    %300 = vst [vmem:[#allocation4 + $0x18] sm:$0xff] %v274
    %301 = vst [vmem:[#allocation4 + $0x20] sm:$0xff] %v154
    %302 = vst [vmem:[#allocation4 + $0x28] sm:$0xff] %v195
    %303 = vst [vmem:[#allocation4 + $0x30] sm:$0xff] %v236
    %304 = vst [vmem:[#allocation4 + $0x38] sm:$0xff] %v277
    %305 = vst [vmem:[#allocation4 + $0x40] sm:$0xff] %v157
    %306 = vst [vmem:[#allocation4 + $0x48] sm:$0xff] %v198
    %307 = vst [vmem:[#allocation4 + $0x50] sm:$0xff] %v239
    %308 = vst [vmem:[#allocation4 + $0x58] sm:$0xff] %v280
    %309 = vst [vmem:[#allocation4 + $0x60] sm:$0xff] %v160
    %310 = vst [vmem:[#allocation4 + $0x68] sm:$0xff] %v201
    %311 = vst [vmem:[#allocation4 + $0x70] sm:$0xff] %v242
    %312 = vst [vmem:[#allocation4 + $0x78] sm:$0xff] %v283
    %313 = vst [vmem:[#allocation4 + $0x80] sm:$0xff] %v163
    %314 = vst [vmem:[#allocation4 + $0x88] sm:$0xff] %v204
    %315 = vst [vmem:[#allocation4 + $0x90] sm:$0xff] %v245
    %316 = vst [vmem:[#allocation4 + $0x98] sm:$0xff] %v286
    %317 = vst [vmem:[#allocation4 + $0xa0] sm:$0xff] %v166
    %318 = vst [vmem:[#allocation4 + $0xa8] sm:$0xff] %v207
    %319 = vst [vmem:[#allocation4 + $0xb0] sm:$0xff] %v248
    %320 = vst [vmem:[#allocation4 + $0xb8] sm:$0xff] %v289
    %321 = vst [vmem:[#allocation4 + $0xc0] sm:$0xff] %v169
    %322 = vst [vmem:[#allocation4 + $0xc8] sm:$0xff] %v210
    %323 = vst [vmem:[#allocation4 + $0xd0] sm:$0xff] %v251
    %324 = vst [vmem:[#allocation4 + $0xd8] sm:$0xff] %v292
    %325 = vst [vmem:[#allocation4 + $0xe0] sm:$0xff] %v172
    %326 = vst [vmem:[#allocation4 + $0xe8] sm:$0xff] %v213
    %327 = vst [vmem:[#allocation4 + $0xf0] sm:$0xff] %v254
    %328 = vst [vmem:[#allocation4 + $0xf8] sm:$0xff] %v295
    %v329 = vld [vmem:[%s1] sm:$0xff]
    %v330 = vld [vmem:[#allocation10] sm:$0xff]
    %v331 = vld [vmem:[#allocation10 + $0x8] sm:$0xff]
    %v332 = vld [vmem:[#allocation10 + $0x10] sm:$0xff]
    %v333 = vld [vmem:[#allocation10 + $0x18] sm:$0xff]
    %v334 = vld [vmem:[#allocation10 + $0x20] sm:$0xff]
    %v335 = vld [vmem:[#allocation10 + $0x28] sm:$0xff]
    %v336 = vld [vmem:[#allocation10 + $0x30] sm:$0xff]
    %v337 = vld [vmem:[#allocation10 + $0x38] sm:$0xff]
    %v338 = vld [vmem:[#allocation10 + $0x40] sm:$0xff]
    %v339 = vld [vmem:[#allocation10 + $0x48] sm:$0xff]
    %v340 = vld [vmem:[#allocation10 + $0x50] sm:$0xff]
    %v341 = vld [vmem:[#allocation10 + $0x58] sm:$0xff]
    %v342 = vld [vmem:[#allocation10 + $0x60] sm:$0xff]
    %v343 = vld [vmem:[#allocation10 + $0x68] sm:$0xff]
    %v344 = vld [vmem:[#allocation10 + $0x70] sm:$0xff]
    %v345 = vld [vmem:[#allocation10 + $0x78] sm:$0xff]
    %v346 = vld [vmem:[#allocation10 + $0x80] sm:$0xff]
    %v347 = vld [vmem:[#allocation10 + $0x88] sm:$0xff]
    %v348 = vld [vmem:[#allocation10 + $0x90] sm:$0xff]
    %v349 = vld [vmem:[#allocation10 + $0x98] sm:$0xff]
    %v350 = vld [vmem:[#allocation10 + $0xa0] sm:$0xff]
    %v351 = vld [vmem:[#allocation10 + $0xa8] sm:$0xff]
    %v352 = vld [vmem:[#allocation10 + $0xb0] sm:$0xff]
    %v353 = vld [vmem:[#allocation10 + $0xb8] sm:$0xff]
    %v354 = vld [vmem:[#allocation10 + $0xc0] sm:$0xff]
    %v355 = vld [vmem:[#allocation10 + $0xc8] sm:$0xff]
    %v356 = vld [vmem:[#allocation10 + $0xd0] sm:$0xff]
    %v357 = vld [vmem:[#allocation10 + $0xd8] sm:$0xff]
    %v358 = vld [vmem:[#allocation10 + $0xe0] sm:$0xff]
    %v359 = vld [vmem:[#allocation10 + $0xe8] sm:$0xff]
    %v360 = vld [vmem:[#allocation10 + $0xf0] sm:$0xff]
    %v361 = vld [vmem:[#allocation10 + $0xf8] sm:$0xff]
    %v362 = vld [vmem:[#allocation10 + $0x100] sm:$0xff]
    %v363 = vld [vmem:[#allocation10 + $0x108] sm:$0xff]
    %v364 = vld [vmem:[#allocation10 + $0x110] sm:$0xff]
    %v365 = vld [vmem:[#allocation10 + $0x118] sm:$0xff]
    %v366 = vld [vmem:[#allocation10 + $0x120] sm:$0xff]
    %v367 = vld [vmem:[#allocation10 + $0x128] sm:$0xff]
    %v368 = vld [vmem:[#allocation10 + $0x130] sm:$0xff]
    %v369 = vld [vmem:[#allocation10 + $0x138] sm:$0xff]
    %v370 = vld [vmem:[#allocation10 + $0x140] sm:$0xff]
    %v371 = vld [vmem:[#allocation10 + $0x148] sm:$0xff]
    %v372 = vld [vmem:[#allocation10 + $0x150] sm:$0xff]
    %v373 = vld [vmem:[#allocation10 + $0x158] sm:$0xff]
    %v374 = vld [vmem:[#allocation10 + $0x160] sm:$0xff]
    %v375 = vld [vmem:[#allocation10 + $0x168] sm:$0xff]
    %v376 = vld [vmem:[#allocation10 + $0x170] sm:$0xff]
    %v377 = vld [vmem:[#allocation10 + $0x178] sm:$0xff]
    %v378 = vld [vmem:[#allocation10 + $0x180] sm:$0xff]
    %v379 = vld [vmem:[#allocation10 + $0x188] sm:$0xff]
    %v380 = vld [vmem:[#allocation10 + $0x190] sm:$0xff]
    %v381 = vld [vmem:[#allocation10 + $0x198] sm:$0xff]
    %v382 = vld [vmem:[#allocation10 + $0x1a0] sm:$0xff]
    %v383 = vld [vmem:[#allocation10 + $0x1a8] sm:$0xff]
    %v384 = vld [vmem:[#allocation10 + $0x1b0] sm:$0xff]
    %v385 = vld [vmem:[#allocation10 + $0x1b8] sm:$0xff]
    %v386 = vld [vmem:[#allocation10 + $0x1c0] sm:$0xff]
    %v387 = vld [vmem:[#allocation10 + $0x1c8] sm:$0xff]
    %v388 = vld [vmem:[#allocation10 + $0x1d0] sm:$0xff]
    %v389 = vld [vmem:[#allocation10 + $0x1d8] sm:$0xff]
    %v390 = vld [vmem:[#allocation10 + $0x1e0] sm:$0xff]
    %v391 = vld [vmem:[#allocation10 + $0x1e8] sm:$0xff]
    %v392 = vld [vmem:[#allocation10 + $0x1f0] sm:$0xff]
    %v393 = vld [vmem:[#allocation10 + $0x1f8] sm:$0xff]
    %s394 = smul.u32 0, 8
    %v395 = vld [vmem:[#allocation2] sm:$0xff]
    %v396 = vld [vmem:[#allocation3] sm:$0xff]
    %v397 = vld [vmem:[#allocation4] sm:$0xff]
    %v398 = vld [vmem:[#allocation4 + $0x8] sm:$0xff]
    %v399 = vld [vmem:[#allocation4 + $0x10] sm:$0xff]
    %v400 = vld [vmem:[#allocation4 + $0x18] sm:$0xff]
    %401 = vmatpush.msra.mxu0 %v390
    %402 = vmatpush.msra.mxu0 %v386
    %403 = vmatpush.msra.mxu0 %v382
    %404 = vmatpush.msra.mxu0 %v378
    %405 = vmatpush.msra.mxu0 %v374
    %406 = vmatpush.msra.mxu0 %v370
    %407 = vmatpush.msra.mxu0 %v366
    %408 = vmatpush.msra.mxu0 %v362
    %409 = vmatpush.msra.mxu0 %v358
    %410 = vmatpush.msra.mxu0 %v354
    %411 = vmatpush.msra.mxu0 %v350
    %412 = vmatpush.msra.mxu0 %v346
    %413 = vmatpush.msra.mxu0 %v342
    %414 = vmatpush.msra.mxu0 %v338
    %415 = vmatpush.msra.mxu0 %v334
    %416 = vmatpush.msra.mxu0 %v330
    %417 = vmatmul.f32.gmra.mxu0 %v395
    %v418 = vpop.f32.mrf.mxu0
    %v419 = vadd.f32 0.0, %v418
    %420 = vdwg.mxu0
    %421 = vmatpush.msra.mxu0 %v391
    %422 = vmatpush.msra.mxu0 %v387
    %423 = vmatpush.msra.mxu0 %v383
    %424 = vmatpush.msra.mxu0 %v379
    %425 = vmatpush.msra.mxu0 %v375
    %426 = vmatpush.msra.mxu0 %v371
    %427 = vmatpush.msra.mxu0 %v367
    %428 = vmatpush.msra.mxu0 %v363
    %429 = vmatpush.msra.mxu0 %v359
    %430 = vmatpush.msra.mxu0 %v355
    %431 = vmatpush.msra.mxu0 %v351
    %432 = vmatpush.msra.mxu0 %v347
    %433 = vmatpush.msra.mxu0 %v343
    %434 = vmatpush.msra.mxu0 %v339
    %435 = vmatpush.msra.mxu0 %v335
    %436 = vmatpush.msra.mxu0 %v331
    %437 = vmatmul.f32.gmra.mxu0 %v395
    %v438 = vpop.f32.mrf.mxu0
    %v439 = vadd.f32 0.0, %v438
    %440 = vdwg.mxu0
    %441 = vmatpush.msra.mxu0 %v392
    %442 = vmatpush.msra.mxu0 %v388
    %443 = vmatpush.msra.mxu0 %v384
    %444 = vmatpush.msra.mxu0 %v380
    %445 = vmatpush.msra.mxu0 %v376
    %446 = vmatpush.msra.mxu0 %v372
    %447 = vmatpush.msra.mxu0 %v368
    %448 = vmatpush.msra.mxu0 %v364
    %449 = vmatpush.msra.mxu0 %v360
    %450 = vmatpush.msra.mxu0 %v356
    %451 = vmatpush.msra.mxu0 %v352
    %452 = vmatpush.msra.mxu0 %v348
    %453 = vmatpush.msra.mxu0 %v344
    %454 = vmatpush.msra.mxu0 %v340
    %455 = vmatpush.msra.mxu0 %v336
    %456 = vmatpush.msra.mxu0 %v332
    %457 = vmatmul.f32.gmra.mxu0 %v395
    %v458 = vpop.f32.mrf.mxu0
    %v459 = vadd.f32 0.0, %v458
    %460 = vdwg.mxu0
    %461 = vmatpush.msra.mxu0 %v393
    %462 = vmatpush.msra.mxu0 %v389
    %463 = vmatpush.msra.mxu0 %v385
    %464 = vmatpush.msra.mxu0 %v381
    %465 = vmatpush.msra.mxu0 %v377
    %466 = vmatpush.msra.mxu0 %v373
    %467 = vmatpush.msra.mxu0 %v369
    %468 = vmatpush.msra.mxu0 %v365
    %469 = vmatpush.msra.mxu0 %v361
    %470 = vmatpush.msra.mxu0 %v357
    %471 = vmatpush.msra.mxu0 %v353
    %472 = vmatpush.msra.mxu0 %v349
    %473 = vmatpush.msra.mxu0 %v345
    %474 = vmatpush.msra.mxu0 %v341
    %475 = vmatpush.msra.mxu0 %v337
    %476 = vmatpush.msra.mxu0 %v333
    %477 = vmatmul.f32.gmra.mxu0 %v395
    %v478 = vpop.f32.mrf.mxu0
    %v479 = vadd.f32 0.0, %v478
    %480 = vdwg.mxu0
    %v481 = vadd.f32 %v397, %v419
    %v482 = vadd.f32 %v398, %v439
    %v483 = vadd.f32 %v399, %v459
    %v484 = vadd.f32 %v400, %v479
    %v485 = vxor.u32 %v481, 2147483648
    %v486 = vmul.f32 %v485, 1.442695
    %v487 = vpow.pop %v486
    %v488 = vadd.f32 %v487, 1.0
    %v489 = vrcp.pop %v488
    %v490 = vmul.f32 %v488, %v489
    %v491 = vsub.f32 1.0, %v490
    %v492 = vmul.f32 %v489, %v491
    %v493 = vadd.f32 %v489, %v492
    %vm494 = vweird.f32 %v488
    %vm495 = vweird.f32 %v489
    %vm496 = vmor %vm494, %vm495
    %v497 = vsel %vm496, %v489, %v493
    %v498 = vand.u32 2147483647, %v488
    %vm499 = vcmp.eq.f32.partialorder %v498, 8.507059e+37
    %v500 = vand.u32 %v488, 2147483648
    %v501 = vor.u32 1.1754944e-38, %v500
    %v502 = vsel %vm499, %v501, %v497
    %v503 = vmul.f32 1.0, %v502
    %v504 = vxor.u32 %v482, 2147483648
    %v505 = vmul.f32 %v504, 1.442695
    %v506 = vpow.pop %v505
    %v507 = vadd.f32 %v506, 1.0
    %v508 = vrcp.pop %v507
    %v509 = vmul.f32 %v507, %v508
    %v510 = vsub.f32 1.0, %v509
    %v511 = vmul.f32 %v508, %v510
    %v512 = vadd.f32 %v508, %v511
    %vm513 = vweird.f32 %v507
    %vm514 = vweird.f32 %v508
    %vm515 = vmor %vm513, %vm514
    %v516 = vsel %vm515, %v508, %v512
    %v517 = vand.u32 2147483647, %v507
    %vm518 = vcmp.eq.f32.partialorder %v517, 8.507059e+37
    %v519 = vand.u32 %v507, 2147483648
    %v520 = vor.u32 1.1754944e-38, %v519
    %v521 = vsel %vm518, %v520, %v516
    %v522 = vmul.f32 1.0, %v521
    %v523 = vtanh.pop %v483
    %v524 = vxor.u32 %v484, 2147483648
    %v525 = vmul.f32 %v524, 1.442695
    %v526 = vpow.pop %v525
    %v527 = vadd.f32 %v526, 1.0
    %v528 = vrcp.pop %v527
    %v529 = vmul.f32 %v527, %v528
    %v530 = vsub.f32 1.0, %v529
    %v531 = vmul.f32 %v528, %v530
    %v532 = vadd.f32 %v528, %v531
    %vm533 = vweird.f32 %v527
    %vm534 = vweird.f32 %v528
    %vm535 = vmor %vm533, %vm534
    %v536 = vsel %vm535, %v528, %v532
    %v537 = vand.u32 2147483647, %v527
    %vm538 = vcmp.eq.f32.partialorder %v537, 8.507059e+37
    %v539 = vand.u32 %v527, 2147483648
    %v540 = vor.u32 1.1754944e-38, %v539
    %v541 = vsel %vm538, %v540, %v536
    %v542 = vmul.f32 1.0, %v541
    %v543 = vmul.f32 %v522, %v396
    %v544 = vmul.f32 %v503, %v523
    %v545 = vadd.f32 %v543, %v544
    %v546 = vtanh.pop %v545
    %v547 = vmul.f32 %v542, %v546
    %v548 = vstv %s394
    %vm549 = vcmp.lt.s32.totalorder %v548, %v329
    %v550 = vsel %vm549, 1, 0
    %551 = vset.pattern.permute.xlu0 0
    %552 = vperm.xlu0 %551, %v550
    %v553 = vpop.permute.xlu0 %552
    %vm554 = vcmp.eq.s32.totalorder %v553, 1
    %v555 = vsel %vm554, %v547, 0.0
    %556 = vst [vmem:[#allocation11] sm:$0xff] %v555
    %v557 = vsel %vm554, %v547, %v395
    %v558 = vsel %vm554, %v545, %v396
    %s559 = scalar_lea.vmem [#allocation4], 32
    %v560 = vld [vmem:[%s559] sm:$0xff]
    %v561 = vld [vmem:[%s559 + $0x8] sm:$0xff]
    %v562 = vld [vmem:[%s559 + $0x10] sm:$0xff]
    %v563 = vld [vmem:[%s559 + $0x18] sm:$0xff]
    %564 = vmatpush.msra.mxu0 %v390
    %565 = vmatpush.msra.mxu0 %v386
    %566 = vmatpush.msra.mxu0 %v382
    %567 = vmatpush.msra.mxu0 %v378
    %568 = vmatpush.msra.mxu0 %v374
    %569 = vmatpush.msra.mxu0 %v370
    %570 = vmatpush.msra.mxu0 %v366
    %571 = vmatpush.msra.mxu0 %v362
    %572 = vmatpush.msra.mxu0 %v358
    %573 = vmatpush.msra.mxu0 %v354
    %574 = vmatpush.msra.mxu0 %v350
    %575 = vmatpush.msra.mxu0 %v346
    %576 = vmatpush.msra.mxu0 %v342
    %577 = vmatpush.msra.mxu0 %v338
    %578 = vmatpush.msra.mxu0 %v334
    %579 = vmatpush.msra.mxu0 %v330
    %580 = vmatmul.f32.gmra.mxu0 %v557
    %v581 = vpop.f32.mrf.mxu0
    %v582 = vadd.f32 0.0, %v581
    %583 = vdwg.mxu0
    %584 = vmatpush.msra.mxu0 %v391
    %585 = vmatpush.msra.mxu0 %v387
    %586 = vmatpush.msra.mxu0 %v383
    %587 = vmatpush.msra.mxu0 %v379
    %588 = vmatpush.msra.mxu0 %v375
    %589 = vmatpush.msra.mxu0 %v371
    %590 = vmatpush.msra.mxu0 %v367
    %591 = vmatpush.msra.mxu0 %v363
    %592 = vmatpush.msra.mxu0 %v359
    %593 = vmatpush.msra.mxu0 %v355
    %594 = vmatpush.msra.mxu0 %v351
    %595 = vmatpush.msra.mxu0 %v347
    %596 = vmatpush.msra.mxu0 %v343
    %597 = vmatpush.msra.mxu0 %v339
    %598 = vmatpush.msra.mxu0 %v335
    %599 = vmatpush.msra.mxu0 %v331
    %600 = vmatmul.f32.gmra.mxu0 %v557
    %v601 = vpop.f32.mrf.mxu0
    %v602 = vadd.f32 0.0, %v601
    %603 = vdwg.mxu0
    %604 = vmatpush.msra.mxu0 %v392
    %605 = vmatpush.msra.mxu0 %v388
    %606 = vmatpush.msra.mxu0 %v384
    %607 = vmatpush.msra.mxu0 %v380
    %608 = vmatpush.msra.mxu0 %v376
    %609 = vmatpush.msra.mxu0 %v372
    %610 = vmatpush.msra.mxu0 %v368
    %611 = vmatpush.msra.mxu0 %v364
    %612 = vmatpush.msra.mxu0 %v360
    %613 = vmatpush.msra.mxu0 %v356
    %614 = vmatpush.msra.mxu0 %v352
    %615 = vmatpush.msra.mxu0 %v348
    %616 = vmatpush.msra.mxu0 %v344
    %617 = vmatpush.msra.mxu0 %v340
    %618 = vmatpush.msra.mxu0 %v336
    %619 = vmatpush.msra.mxu0 %v332
    %620 = vmatmul.f32.gmra.mxu0 %v557
    %v621 = vpop.f32.mrf.mxu0
    %v622 = vadd.f32 0.0, %v621
    %623 = vdwg.mxu0
    %624 = vmatpush.msra.mxu0 %v393
    %625 = vmatpush.msra.mxu0 %v389
    %626 = vmatpush.msra.mxu0 %v385
    %627 = vmatpush.msra.mxu0 %v381
    %628 = vmatpush.msra.mxu0 %v377
    %629 = vmatpush.msra.mxu0 %v373
    %630 = vmatpush.msra.mxu0 %v369
    %631 = vmatpush.msra.mxu0 %v365
    %632 = vmatpush.msra.mxu0 %v361
    %633 = vmatpush.msra.mxu0 %v357
    %634 = vmatpush.msra.mxu0 %v353
    %635 = vmatpush.msra.mxu0 %v349
    %636 = vmatpush.msra.mxu0 %v345
    %637 = vmatpush.msra.mxu0 %v341
    %638 = vmatpush.msra.mxu0 %v337
    %639 = vmatpush.msra.mxu0 %v333
    %640 = vmatmul.f32.gmra.mxu0 %v557
    %v641 = vpop.f32.mrf.mxu0
    %v642 = vadd.f32 0.0, %v641
    %643 = vdwg.mxu0
    %v644 = vadd.f32 %v560, %v582
    %v645 = vadd.f32 %v561, %v602
    %v646 = vadd.f32 %v562, %v622
    %v647 = vadd.f32 %v563, %v642
    %v648 = vxor.u32 %v644, 2147483648
    %v649 = vmul.f32 %v648, 1.442695
    %v650 = vpow.pop %v649
    %v651 = vadd.f32 %v650, 1.0
    %v652 = vrcp.pop %v651
    %v653 = vmul.f32 %v651, %v652
    %v654 = vsub.f32 1.0, %v653
    %v655 = vmul.f32 %v652, %v654
    %v656 = vadd.f32 %v652, %v655
    %vm657 = vweird.f32 %v651
    %vm658 = vweird.f32 %v652
    %vm659 = vmor %vm657, %vm658
    %v660 = vsel %vm659, %v652, %v656
    %v661 = vand.u32 2147483647, %v651
    %vm662 = vcmp.eq.f32.partialorder %v661, 8.507059e+37
    %v663 = vand.u32 %v651, 2147483648
    %v664 = vor.u32 1.1754944e-38, %v663
    %v665 = vsel %vm662, %v664, %v660
    %v666 = vmul.f32 1.0, %v665
    %v667 = vxor.u32 %v645, 2147483648
    %v668 = vmul.f32 %v667, 1.442695
    %v669 = vpow.pop %v668
    %v670 = vadd.f32 %v669, 1.0
    %v671 = vrcp.pop %v670
    %v672 = vmul.f32 %v670, %v671
    %v673 = vsub.f32 1.0, %v672
    %v674 = vmul.f32 %v671, %v673
    %v675 = vadd.f32 %v671, %v674
    %vm676 = vweird.f32 %v670
    %vm677 = vweird.f32 %v671
    %vm678 = vmor %vm676, %vm677
    %v679 = vsel %vm678, %v671, %v675
    %v680 = vand.u32 2147483647, %v670
    %vm681 = vcmp.eq.f32.partialorder %v680, 8.507059e+37
    %v682 = vand.u32 %v670, 2147483648
    %v683 = vor.u32 1.1754944e-38, %v682
    %v684 = vsel %vm681, %v683, %v679
    %v685 = vmul.f32 1.0, %v684
    %v686 = vtanh.pop %v646
    %v687 = vxor.u32 %v647, 2147483648
    %v688 = vmul.f32 %v687, 1.442695
    %v689 = vpow.pop %v688
    %v690 = vadd.f32 %v689, 1.0
    %v691 = vrcp.pop %v690
    %v692 = vmul.f32 %v690, %v691
    %v693 = vsub.f32 1.0, %v692
    %v694 = vmul.f32 %v691, %v693
    %v695 = vadd.f32 %v691, %v694
    %vm696 = vweird.f32 %v690
    %vm697 = vweird.f32 %v691
    %vm698 = vmor %vm696, %vm697
    %v699 = vsel %vm698, %v691, %v695
    %v700 = vand.u32 2147483647, %v690
    %vm701 = vcmp.eq.f32.partialorder %v700, 8.507059e+37
    %v702 = vand.u32 %v690, 2147483648
    %v703 = vor.u32 1.1754944e-38, %v702
    %v704 = vsel %vm701, %v703, %v699
    %v705 = vmul.f32 1.0, %v704
    %v706 = vmul.f32 %v685, %v558
    %v707 = vmul.f32 %v666, %v686
    %v708 = vadd.f32 %v706, %v707
    %v709 = vtanh.pop %v708
    %v710 = vmul.f32 %v705, %v709
    %s711 = sadd.s32 %s394, 1
    %v712 = vstv %s711
    %vm713 = vcmp.lt.s32.totalorder %v712, %v329
    %v714 = vsel %vm713, 1, 0
    %715 = vset.pattern.permute.xlu0 0
    %716 = vperm.xlu0 %715, %v714
    %v717 = vpop.permute.xlu0 %716
    %vm718 = vcmp.eq.s32.totalorder %v717, 1
    %v719 = vsel %vm718, %v710, 0.0
    %s720 = scalar_lea.vmem [#allocation11], 8
    %721 = vst [vmem:[%s720] sm:$0xff] %v719
    %v722 = vsel %vm718, %v710, %v557
    %v723 = vsel %vm718, %v708, %v558
    %s724 = scalar_lea.vmem [#allocation4], 64
    %v725 = vld [vmem:[%s724] sm:$0xff]
    %v726 = vld [vmem:[%s724 + $0x8] sm:$0xff]
    %v727 = vld [vmem:[%s724 + $0x10] sm:$0xff]
    %v728 = vld [vmem:[%s724 + $0x18] sm:$0xff]
    %729 = vmatpush.msra.mxu0 %v390
    %730 = vmatpush.msra.mxu0 %v386
    %731 = vmatpush.msra.mxu0 %v382
    %732 = vmatpush.msra.mxu0 %v378
    %733 = vmatpush.msra.mxu0 %v374
    %734 = vmatpush.msra.mxu0 %v370
    %735 = vmatpush.msra.mxu0 %v366
    %736 = vmatpush.msra.mxu0 %v362
    %737 = vmatpush.msra.mxu0 %v358
    %738 = vmatpush.msra.mxu0 %v354
    %739 = vmatpush.msra.mxu0 %v350
    %740 = vmatpush.msra.mxu0 %v346
    %741 = vmatpush.msra.mxu0 %v342
    %742 = vmatpush.msra.mxu0 %v338
    %743 = vmatpush.msra.mxu0 %v334
    %744 = vmatpush.msra.mxu0 %v330
    %745 = vmatmul.f32.gmra.mxu0 %v722
    %v746 = vpop.f32.mrf.mxu0
    %v747 = vadd.f32 0.0, %v746
    %748 = vdwg.mxu0
    %749 = vmatpush.msra.mxu0 %v391
    %750 = vmatpush.msra.mxu0 %v387
    %751 = vmatpush.msra.mxu0 %v383
    %752 = vmatpush.msra.mxu0 %v379
    %753 = vmatpush.msra.mxu0 %v375
    %754 = vmatpush.msra.mxu0 %v371
    %755 = vmatpush.msra.mxu0 %v367
    %756 = vmatpush.msra.mxu0 %v363
    %757 = vmatpush.msra.mxu0 %v359
    %758 = vmatpush.msra.mxu0 %v355
    %759 = vmatpush.msra.mxu0 %v351
    %760 = vmatpush.msra.mxu0 %v347
    %761 = vmatpush.msra.mxu0 %v343
    %762 = vmatpush.msra.mxu0 %v339
    %763 = vmatpush.msra.mxu0 %v335
    %764 = vmatpush.msra.mxu0 %v331
    %765 = vmatmul.f32.gmra.mxu0 %v722
    %v766 = vpop.f32.mrf.mxu0
    %v767 = vadd.f32 0.0, %v766
    %768 = vdwg.mxu0
    %769 = vmatpush.msra.mxu0 %v392
    %770 = vmatpush.msra.mxu0 %v388
    %771 = vmatpush.msra.mxu0 %v384
    %772 = vmatpush.msra.mxu0 %v380
    %773 = vmatpush.msra.mxu0 %v376
    %774 = vmatpush.msra.mxu0 %v372
    %775 = vmatpush.msra.mxu0 %v368
    %776 = vmatpush.msra.mxu0 %v364
    %777 = vmatpush.msra.mxu0 %v360
    %778 = vmatpush.msra.mxu0 %v356
    %779 = vmatpush.msra.mxu0 %v352
    %780 = vmatpush.msra.mxu0 %v348
    %781 = vmatpush.msra.mxu0 %v344
    %782 = vmatpush.msra.mxu0 %v340
    %783 = vmatpush.msra.mxu0 %v336
    %784 = vmatpush.msra.mxu0 %v332
    %785 = vmatmul.f32.gmra.mxu0 %v722
    %v786 = vpop.f32.mrf.mxu0
    %v787 = vadd.f32 0.0, %v786
    %788 = vdwg.mxu0
    %789 = vmatpush.msra.mxu0 %v393
    %790 = vmatpush.msra.mxu0 %v389
    %791 = vmatpush.msra.mxu0 %v385
    %792 = vmatpush.msra.mxu0 %v381
    %793 = vmatpush.msra.mxu0 %v377
    %794 = vmatpush.msra.mxu0 %v373
    %795 = vmatpush.msra.mxu0 %v369
    %796 = vmatpush.msra.mxu0 %v365
    %797 = vmatpush.msra.mxu0 %v361
    %798 = vmatpush.msra.mxu0 %v357
    %799 = vmatpush.msra.mxu0 %v353
    %800 = vmatpush.msra.mxu0 %v349
    %801 = vmatpush.msra.mxu0 %v345
    %802 = vmatpush.msra.mxu0 %v341
    %803 = vmatpush.msra.mxu0 %v337
    %804 = vmatpush.msra.mxu0 %v333
    %805 = vmatmul.f32.gmra.mxu0 %v722
    %v806 = vpop.f32.mrf.mxu0
    %v807 = vadd.f32 0.0, %v806
    %808 = vdwg.mxu0
    %v809 = vadd.f32 %v725, %v747
    %v810 = vadd.f32 %v726, %v767
    %v811 = vadd.f32 %v727, %v787
    %v812 = vadd.f32 %v728, %v807
    %v813 = vxor.u32 %v809, 2147483648
    %v814 = vmul.f32 %v813, 1.442695
    %v815 = vpow.pop %v814
    %v816 = vadd.f32 %v815, 1.0
    %v817 = vrcp.pop %v816
    %v818 = vmul.f32 %v816, %v817
    %v819 = vsub.f32 1.0, %v818
    %v820 = vmul.f32 %v817, %v819
    %v821 = vadd.f32 %v817, %v820
    %vm822 = vweird.f32 %v816
    %vm823 = vweird.f32 %v817
    %vm824 = vmor %vm822, %vm823
    %v825 = vsel %vm824, %v817, %v821
    %v826 = vand.u32 2147483647, %v816
    %vm827 = vcmp.eq.f32.partialorder %v826, 8.507059e+37
    %v828 = vand.u32 %v816, 2147483648
    %v829 = vor.u32 1.1754944e-38, %v828
    %v830 = vsel %vm827, %v829, %v825
    %v831 = vmul.f32 1.0, %v830
    %v832 = vxor.u32 %v810, 2147483648
    %v833 = vmul.f32 %v832, 1.442695
    %v834 = vpow.pop %v833
    %v835 = vadd.f32 %v834, 1.0
    %v836 = vrcp.pop %v835
    %v837 = vmul.f32 %v835, %v836
    %v838 = vsub.f32 1.0, %v837
    %v839 = vmul.f32 %v836, %v838
    %v840 = vadd.f32 %v836, %v839
    %vm841 = vweird.f32 %v835
    %vm842 = vweird.f32 %v836
    %vm843 = vmor %vm841, %vm842
    %v844 = vsel %vm843, %v836, %v840
    %v845 = vand.u32 2147483647, %v835
    %vm846 = vcmp.eq.f32.partialorder %v845, 8.507059e+37
    %v847 = vand.u32 %v835, 2147483648
    %v848 = vor.u32 1.1754944e-38, %v847
    %v849 = vsel %vm846, %v848, %v844
    %v850 = vmul.f32 1.0, %v849
    %v851 = vtanh.pop %v811
    %v852 = vxor.u32 %v812, 2147483648
    %v853 = vmul.f32 %v852, 1.442695
    %v854 = vpow.pop %v853
    %v855 = vadd.f32 %v854, 1.0
    %v856 = vrcp.pop %v855
    %v857 = vmul.f32 %v855, %v856
    %v858 = vsub.f32 1.0, %v857
    %v859 = vmul.f32 %v856, %v858
    %v860 = vadd.f32 %v856, %v859
    %vm861 = vweird.f32 %v855
    %vm862 = vweird.f32 %v856
    %vm863 = vmor %vm861, %vm862
    %v864 = vsel %vm863, %v856, %v860
    %v865 = vand.u32 2147483647, %v855
    %vm866 = vcmp.eq.f32.partialorder %v865, 8.507059e+37
    %v867 = vand.u32 %v855, 2147483648
    %v868 = vor.u32 1.1754944e-38, %v867
    %v869 = vsel %vm866, %v868, %v864
    %v870 = vmul.f32 1.0, %v869
    %v871 = vmul.f32 %v850, %v723
    %v872 = vmul.f32 %v831, %v851
    %v873 = vadd.f32 %v871, %v872
    %v874 = vtanh.pop %v873
    %v875 = vmul.f32 %v870, %v874
    %s876 = sadd.s32 %s394, 2
    %v877 = vstv %s876
    %vm878 = vcmp.lt.s32.totalorder %v877, %v329
    %v879 = vsel %vm878, 1, 0
    %880 = vset.pattern.permute.xlu0 0
    %881 = vperm.xlu0 %880, %v879
    %v882 = vpop.permute.xlu0 %881
    %vm883 = vcmp.eq.s32.totalorder %v882, 1
    %v884 = vsel %vm883, %v875, 0.0
    %s885 = scalar_lea.vmem [#allocation11], 16
    %886 = vst [vmem:[%s885] sm:$0xff] %v884
    %v887 = vsel %vm883, %v875, %v722
    %v888 = vsel %vm883, %v873, %v723
    %s889 = scalar_lea.vmem [#allocation4], 96
    %v890 = vld [vmem:[%s889] sm:$0xff]
    %v891 = vld [vmem:[%s889 + $0x8] sm:$0xff]
    %v892 = vld [vmem:[%s889 + $0x10] sm:$0xff]
    %v893 = vld [vmem:[%s889 + $0x18] sm:$0xff]
    %894 = vmatpush.msra.mxu0 %v390
    %895 = vmatpush.msra.mxu0 %v386
    %896 = vmatpush.msra.mxu0 %v382
    %897 = vmatpush.msra.mxu0 %v378
    %898 = vmatpush.msra.mxu0 %v374
    %899 = vmatpush.msra.mxu0 %v370
    %900 = vmatpush.msra.mxu0 %v366
    %901 = vmatpush.msra.mxu0 %v362
    %902 = vmatpush.msra.mxu0 %v358
    %903 = vmatpush.msra.mxu0 %v354
    %904 = vmatpush.msra.mxu0 %v350
    %905 = vmatpush.msra.mxu0 %v346
    %906 = vmatpush.msra.mxu0 %v342
    %907 = vmatpush.msra.mxu0 %v338
    %908 = vmatpush.msra.mxu0 %v334
    %909 = vmatpush.msra.mxu0 %v330
    %910 = vmatmul.f32.gmra.mxu0 %v887
    %v911 = vpop.f32.mrf.mxu0
    %v912 = vadd.f32 0.0, %v911
    %913 = vdwg.mxu0
    %914 = vmatpush.msra.mxu0 %v391
    %915 = vmatpush.msra.mxu0 %v387
    %916 = vmatpush.msra.mxu0 %v383
    %917 = vmatpush.msra.mxu0 %v379
    %918 = vmatpush.msra.mxu0 %v375
    %919 = vmatpush.msra.mxu0 %v371
    %920 = vmatpush.msra.mxu0 %v367
    %921 = vmatpush.msra.mxu0 %v363
    %922 = vmatpush.msra.mxu0 %v359
    %923 = vmatpush.msra.mxu0 %v355
    %924 = vmatpush.msra.mxu0 %v351
    %925 = vmatpush.msra.mxu0 %v347
    %926 = vmatpush.msra.mxu0 %v343
    %927 = vmatpush.msra.mxu0 %v339
    %928 = vmatpush.msra.mxu0 %v335
    %929 = vmatpush.msra.mxu0 %v331
    %930 = vmatmul.f32.gmra.mxu0 %v887
    %v931 = vpop.f32.mrf.mxu0
    %v932 = vadd.f32 0.0, %v931
    %933 = vdwg.mxu0
    %934 = vmatpush.msra.mxu0 %v392
    %935 = vmatpush.msra.mxu0 %v388
    %936 = vmatpush.msra.mxu0 %v384
    %937 = vmatpush.msra.mxu0 %v380
    %938 = vmatpush.msra.mxu0 %v376
    %939 = vmatpush.msra.mxu0 %v372
    %940 = vmatpush.msra.mxu0 %v368
    %941 = vmatpush.msra.mxu0 %v364
    %942 = vmatpush.msra.mxu0 %v360
    %943 = vmatpush.msra.mxu0 %v356
    %944 = vmatpush.msra.mxu0 %v352
    %945 = vmatpush.msra.mxu0 %v348
    %946 = vmatpush.msra.mxu0 %v344
    %947 = vmatpush.msra.mxu0 %v340
    %948 = vmatpush.msra.mxu0 %v336
    %949 = vmatpush.msra.mxu0 %v332
    %950 = vmatmul.f32.gmra.mxu0 %v887
    %v951 = vpop.f32.mrf.mxu0
    %v952 = vadd.f32 0.0, %v951
    %953 = vdwg.mxu0
    %954 = vmatpush.msra.mxu0 %v393
    %955 = vmatpush.msra.mxu0 %v389
    %956 = vmatpush.msra.mxu0 %v385
    %957 = vmatpush.msra.mxu0 %v381
    %958 = vmatpush.msra.mxu0 %v377
    %959 = vmatpush.msra.mxu0 %v373
    %960 = vmatpush.msra.mxu0 %v369
    %961 = vmatpush.msra.mxu0 %v365
    %962 = vmatpush.msra.mxu0 %v361
    %963 = vmatpush.msra.mxu0 %v357
    %964 = vmatpush.msra.mxu0 %v353
    %965 = vmatpush.msra.mxu0 %v349
    %966 = vmatpush.msra.mxu0 %v345
    %967 = vmatpush.msra.mxu0 %v341
    %968 = vmatpush.msra.mxu0 %v337
    %969 = vmatpush.msra.mxu0 %v333
    %970 = vmatmul.f32.gmra.mxu0 %v887
    %v971 = vpop.f32.mrf.mxu0
    %v972 = vadd.f32 0.0, %v971
    %973 = vdwg.mxu0
    %v974 = vadd.f32 %v890, %v912
    %v975 = vadd.f32 %v891, %v932
    %v976 = vadd.f32 %v892, %v952
    %v977 = vadd.f32 %v893, %v972
    %v978 = vxor.u32 %v974, 2147483648
    %v979 = vmul.f32 %v978, 1.442695
    %v980 = vpow.pop %v979
    %v981 = vadd.f32 %v980, 1.0
    %v982 = vrcp.pop %v981
    %v983 = vmul.f32 %v981, %v982
    %v984 = vsub.f32 1.0, %v983
    %v985 = vmul.f32 %v982, %v984
    %v986 = vadd.f32 %v982, %v985
    %vm987 = vweird.f32 %v981
    %vm988 = vweird.f32 %v982
    %vm989 = vmor %vm987, %vm988
    %v990 = vsel %vm989, %v982, %v986
    %v991 = vand.u32 2147483647, %v981
    %vm992 = vcmp.eq.f32.partialorder %v991, 8.507059e+37
    %v993 = vand.u32 %v981, 2147483648
    %v994 = vor.u32 1.1754944e-38, %v993
    %v995 = vsel %vm992, %v994, %v990
    %v996 = vmul.f32 1.0, %v995
    %v997 = vxor.u32 %v975, 2147483648
    %v998 = vmul.f32 %v997, 1.442695
    %v999 = vpow.pop %v998
    %v1000 = vadd.f32 %v999, 1.0
    %v1001 = vrcp.pop %v1000
    %v1002 = vmul.f32 %v1000, %v1001
    %v1003 = vsub.f32 1.0, %v1002
    %v1004 = vmul.f32 %v1001, %v1003
    %v1005 = vadd.f32 %v1001, %v1004
    %vm1006 = vweird.f32 %v1000
    %vm1007 = vweird.f32 %v1001
    %vm1008 = vmor %vm1006, %vm1007
    %v1009 = vsel %vm1008, %v1001, %v1005
    %v1010 = vand.u32 2147483647, %v1000
    %vm1011 = vcmp.eq.f32.partialorder %v1010, 8.507059e+37
    %v1012 = vand.u32 %v1000, 2147483648
    %v1013 = vor.u32 1.1754944e-38, %v1012
    %v1014 = vsel %vm1011, %v1013, %v1009
    %v1015 = vmul.f32 1.0, %v1014
    %v1016 = vtanh.pop %v976
    %v1017 = vxor.u32 %v977, 2147483648
    %v1018 = vmul.f32 %v1017, 1.442695
    %v1019 = vpow.pop %v1018
    %v1020 = vadd.f32 %v1019, 1.0
    %v1021 = vrcp.pop %v1020
    %v1022 = vmul.f32 %v1020, %v1021
    %v1023 = vsub.f32 1.0, %v1022
    %v1024 = vmul.f32 %v1021, %v1023
    %v1025 = vadd.f32 %v1021, %v1024
    %vm1026 = vweird.f32 %v1020
    %vm1027 = vweird.f32 %v1021
    %vm1028 = vmor %vm1026, %vm1027
    %v1029 = vsel %vm1028, %v1021, %v1025
    %v1030 = vand.u32 2147483647, %v1020
    %vm1031 = vcmp.eq.f32.partialorder %v1030, 8.507059e+37
    %v1032 = vand.u32 %v1020, 2147483648
    %v1033 = vor.u32 1.1754944e-38, %v1032
    %v1034 = vsel %vm1031, %v1033, %v1029
    %v1035 = vmul.f32 1.0, %v1034
    %v1036 = vmul.f32 %v1015, %v888
    %v1037 = vmul.f32 %v996, %v1016
    %v1038 = vadd.f32 %v1036, %v1037
    %v1039 = vtanh.pop %v1038
    %v1040 = vmul.f32 %v1035, %v1039
    %s1041 = sadd.s32 %s394, 3
    %v1042 = vstv %s1041
    %vm1043 = vcmp.lt.s32.totalorder %v1042, %v329
    %v1044 = vsel %vm1043, 1, 0
    %1045 = vset.pattern.permute.xlu0 0
    %1046 = vperm.xlu0 %1045, %v1044
    %v1047 = vpop.permute.xlu0 %1046
    %vm1048 = vcmp.eq.s32.totalorder %v1047, 1
    %v1049 = vsel %vm1048, %v1040, 0.0
    %s1050 = scalar_lea.vmem [#allocation11], 24
    %1051 = vst [vmem:[%s1050] sm:$0xff] %v1049
    %v1052 = vsel %vm1048, %v1040, %v887
    %v1053 = vsel %vm1048, %v1038, %v888
    %s1054 = scalar_lea.vmem [#allocation4], 128
    %v1055 = vld [vmem:[%s1054] sm:$0xff]
    %v1056 = vld [vmem:[%s1054 + $0x8] sm:$0xff]
    %v1057 = vld [vmem:[%s1054 + $0x10] sm:$0xff]
    %v1058 = vld [vmem:[%s1054 + $0x18] sm:$0xff]
    %1059 = vmatpush.msra.mxu0 %v390
    %1060 = vmatpush.msra.mxu0 %v386
    %1061 = vmatpush.msra.mxu0 %v382
    %1062 = vmatpush.msra.mxu0 %v378
    %1063 = vmatpush.msra.mxu0 %v374
    %1064 = vmatpush.msra.mxu0 %v370
    %1065 = vmatpush.msra.mxu0 %v366
    %1066 = vmatpush.msra.mxu0 %v362
    %1067 = vmatpush.msra.mxu0 %v358
    %1068 = vmatpush.msra.mxu0 %v354
    %1069 = vmatpush.msra.mxu0 %v350
    %1070 = vmatpush.msra.mxu0 %v346
    %1071 = vmatpush.msra.mxu0 %v342
    %1072 = vmatpush.msra.mxu0 %v338
    %1073 = vmatpush.msra.mxu0 %v334
    %1074 = vmatpush.msra.mxu0 %v330
    %1075 = vmatmul.f32.gmra.mxu0 %v1052
    %v1076 = vpop.f32.mrf.mxu0
    %v1077 = vadd.f32 0.0, %v1076
    %1078 = vdwg.mxu0
    %1079 = vmatpush.msra.mxu0 %v391
    %1080 = vmatpush.msra.mxu0 %v387
    %1081 = vmatpush.msra.mxu0 %v383
    %1082 = vmatpush.msra.mxu0 %v379
    %1083 = vmatpush.msra.mxu0 %v375
    %1084 = vmatpush.msra.mxu0 %v371
    %1085 = vmatpush.msra.mxu0 %v367
    %1086 = vmatpush.msra.mxu0 %v363
    %1087 = vmatpush.msra.mxu0 %v359
    %1088 = vmatpush.msra.mxu0 %v355
    %1089 = vmatpush.msra.mxu0 %v351
    %1090 = vmatpush.msra.mxu0 %v347
    %1091 = vmatpush.msra.mxu0 %v343
    %1092 = vmatpush.msra.mxu0 %v339
    %1093 = vmatpush.msra.mxu0 %v335
    %1094 = vmatpush.msra.mxu0 %v331
    %1095 = vmatmul.f32.gmra.mxu0 %v1052
    %v1096 = vpop.f32.mrf.mxu0
    %v1097 = vadd.f32 0.0, %v1096
    %1098 = vdwg.mxu0
    %1099 = vmatpush.msra.mxu0 %v392
    %1100 = vmatpush.msra.mxu0 %v388
    %1101 = vmatpush.msra.mxu0 %v384
    %1102 = vmatpush.msra.mxu0 %v380
    %1103 = vmatpush.msra.mxu0 %v376
    %1104 = vmatpush.msra.mxu0 %v372
    %1105 = vmatpush.msra.mxu0 %v368
    %1106 = vmatpush.msra.mxu0 %v364
    %1107 = vmatpush.msra.mxu0 %v360
    %1108 = vmatpush.msra.mxu0 %v356
    %1109 = vmatpush.msra.mxu0 %v352
    %1110 = vmatpush.msra.mxu0 %v348
    %1111 = vmatpush.msra.mxu0 %v344
    %1112 = vmatpush.msra.mxu0 %v340
    %1113 = vmatpush.msra.mxu0 %v336
    %1114 = vmatpush.msra.mxu0 %v332
    %1115 = vmatmul.f32.gmra.mxu0 %v1052
    %v1116 = vpop.f32.mrf.mxu0
    %v1117 = vadd.f32 0.0, %v1116
    %1118 = vdwg.mxu0
    %1119 = vmatpush.msra.mxu0 %v393
    %1120 = vmatpush.msra.mxu0 %v389
    %1121 = vmatpush.msra.mxu0 %v385
    %1122 = vmatpush.msra.mxu0 %v381
    %1123 = vmatpush.msra.mxu0 %v377
    %1124 = vmatpush.msra.mxu0 %v373
    %1125 = vmatpush.msra.mxu0 %v369
    %1126 = vmatpush.msra.mxu0 %v365
    %1127 = vmatpush.msra.mxu0 %v361
    %1128 = vmatpush.msra.mxu0 %v357
    %1129 = vmatpush.msra.mxu0 %v353
    %1130 = vmatpush.msra.mxu0 %v349
    %1131 = vmatpush.msra.mxu0 %v345
    %1132 = vmatpush.msra.mxu0 %v341
    %1133 = vmatpush.msra.mxu0 %v337
    %1134 = vmatpush.msra.mxu0 %v333
    %1135 = vmatmul.f32.gmra.mxu0 %v1052
    %v1136 = vpop.f32.mrf.mxu0
    %v1137 = vadd.f32 0.0, %v1136
    %1138 = vdwg.mxu0
    %v1139 = vadd.f32 %v1055, %v1077
    %v1140 = vadd.f32 %v1056, %v1097
    %v1141 = vadd.f32 %v1057, %v1117
    %v1142 = vadd.f32 %v1058, %v1137
    %v1143 = vxor.u32 %v1139, 2147483648
    %v1144 = vmul.f32 %v1143, 1.442695
    %v1145 = vpow.pop %v1144
    %v1146 = vadd.f32 %v1145, 1.0
    %v1147 = vrcp.pop %v1146
    %v1148 = vmul.f32 %v1146, %v1147
    %v1149 = vsub.f32 1.0, %v1148
    %v1150 = vmul.f32 %v1147, %v1149
    %v1151 = vadd.f32 %v1147, %v1150
    %vm1152 = vweird.f32 %v1146
    %vm1153 = vweird.f32 %v1147
    %vm1154 = vmor %vm1152, %vm1153
    %v1155 = vsel %vm1154, %v1147, %v1151
    %v1156 = vand.u32 2147483647, %v1146
    %vm1157 = vcmp.eq.f32.partialorder %v1156, 8.507059e+37
    %v1158 = vand.u32 %v1146, 2147483648
    %v1159 = vor.u32 1.1754944e-38, %v1158
    %v1160 = vsel %vm1157, %v1159, %v1155
    %v1161 = vmul.f32 1.0, %v1160
    %v1162 = vxor.u32 %v1140, 2147483648
    %v1163 = vmul.f32 %v1162, 1.442695
    %v1164 = vpow.pop %v1163
    %v1165 = vadd.f32 %v1164, 1.0
    %v1166 = vrcp.pop %v1165
    %v1167 = vmul.f32 %v1165, %v1166
    %v1168 = vsub.f32 1.0, %v1167
    %v1169 = vmul.f32 %v1166, %v1168
    %v1170 = vadd.f32 %v1166, %v1169
    %vm1171 = vweird.f32 %v1165
    %vm1172 = vweird.f32 %v1166
    %vm1173 = vmor %vm1171, %vm1172
    %v1174 = vsel %vm1173, %v1166, %v1170
    %v1175 = vand.u32 2147483647, %v1165
    %vm1176 = vcmp.eq.f32.partialorder %v1175, 8.507059e+37
    %v1177 = vand.u32 %v1165, 2147483648
    %v1178 = vor.u32 1.1754944e-38, %v1177
    %v1179 = vsel %vm1176, %v1178, %v1174
    %v1180 = vmul.f32 1.0, %v1179
    %v1181 = vtanh.pop %v1141
    %v1182 = vxor.u32 %v1142, 2147483648
    %v1183 = vmul.f32 %v1182, 1.442695
    %v1184 = vpow.pop %v1183
    %v1185 = vadd.f32 %v1184, 1.0
    %v1186 = vrcp.pop %v1185
    %v1187 = vmul.f32 %v1185, %v1186
    %v1188 = vsub.f32 1.0, %v1187
    %v1189 = vmul.f32 %v1186, %v1188
    %v1190 = vadd.f32 %v1186, %v1189
    %vm1191 = vweird.f32 %v1185
    %vm1192 = vweird.f32 %v1186
    %vm1193 = vmor %vm1191, %vm1192
    %v1194 = vsel %vm1193, %v1186, %v1190
    %v1195 = vand.u32 2147483647, %v1185
    %vm1196 = vcmp.eq.f32.partialorder %v1195, 8.507059e+37
    %v1197 = vand.u32 %v1185, 2147483648
    %v1198 = vor.u32 1.1754944e-38, %v1197
    %v1199 = vsel %vm1196, %v1198, %v1194
    %v1200 = vmul.f32 1.0, %v1199
    %v1201 = vmul.f32 %v1180, %v1053
    %v1202 = vmul.f32 %v1161, %v1181
    %v1203 = vadd.f32 %v1201, %v1202
    %v1204 = vtanh.pop %v1203
    %v1205 = vmul.f32 %v1200, %v1204
    %s1206 = sadd.s32 %s394, 4
    %v1207 = vstv %s1206
    %vm1208 = vcmp.lt.s32.totalorder %v1207, %v329
    %v1209 = vsel %vm1208, 1, 0
    %1210 = vset.pattern.permute.xlu0 0
    %1211 = vperm.xlu0 %1210, %v1209
    %v1212 = vpop.permute.xlu0 %1211
    %vm1213 = vcmp.eq.s32.totalorder %v1212, 1
    %v1214 = vsel %vm1213, %v1205, 0.0
    %s1215 = scalar_lea.vmem [#allocation11], 32
    %1216 = vst [vmem:[%s1215] sm:$0xff] %v1214
    %v1217 = vsel %vm1213, %v1205, %v1052
    %v1218 = vsel %vm1213, %v1203, %v1053
    %s1219 = scalar_lea.vmem [#allocation4], 160
    %v1220 = vld [vmem:[%s1219] sm:$0xff]
    %v1221 = vld [vmem:[%s1219 + $0x8] sm:$0xff]
    %v1222 = vld [vmem:[%s1219 + $0x10] sm:$0xff]
    %v1223 = vld [vmem:[%s1219 + $0x18] sm:$0xff]
    %1224 = vmatpush.msra.mxu0 %v390
    %1225 = vmatpush.msra.mxu0 %v386
    %1226 = vmatpush.msra.mxu0 %v382
    %1227 = vmatpush.msra.mxu0 %v378
    %1228 = vmatpush.msra.mxu0 %v374
    %1229 = vmatpush.msra.mxu0 %v370
    %1230 = vmatpush.msra.mxu0 %v366
    %1231 = vmatpush.msra.mxu0 %v362
    %1232 = vmatpush.msra.mxu0 %v358
    %1233 = vmatpush.msra.mxu0 %v354
    %1234 = vmatpush.msra.mxu0 %v350
    %1235 = vmatpush.msra.mxu0 %v346
    %1236 = vmatpush.msra.mxu0 %v342
    %1237 = vmatpush.msra.mxu0 %v338
    %1238 = vmatpush.msra.mxu0 %v334
    %1239 = vmatpush.msra.mxu0 %v330
    %1240 = vmatmul.f32.gmra.mxu0 %v1217
    %v1241 = vpop.f32.mrf.mxu0
    %v1242 = vadd.f32 0.0, %v1241
    %1243 = vdwg.mxu0
    %1244 = vmatpush.msra.mxu0 %v391
    %1245 = vmatpush.msra.mxu0 %v387
    %1246 = vmatpush.msra.mxu0 %v383
    %1247 = vmatpush.msra.mxu0 %v379
    %1248 = vmatpush.msra.mxu0 %v375
    %1249 = vmatpush.msra.mxu0 %v371
    %1250 = vmatpush.msra.mxu0 %v367
    %1251 = vmatpush.msra.mxu0 %v363
    %1252 = vmatpush.msra.mxu0 %v359
    %1253 = vmatpush.msra.mxu0 %v355
    %1254 = vmatpush.msra.mxu0 %v351
    %1255 = vmatpush.msra.mxu0 %v347
    %1256 = vmatpush.msra.mxu0 %v343
    %1257 = vmatpush.msra.mxu0 %v339
    %1258 = vmatpush.msra.mxu0 %v335
    %1259 = vmatpush.msra.mxu0 %v331
    %1260 = vmatmul.f32.gmra.mxu0 %v1217
    %v1261 = vpop.f32.mrf.mxu0
    %v1262 = vadd.f32 0.0, %v1261
    %1263 = vdwg.mxu0
    %1264 = vmatpush.msra.mxu0 %v392
    %1265 = vmatpush.msra.mxu0 %v388
    %1266 = vmatpush.msra.mxu0 %v384
    %1267 = vmatpush.msra.mxu0 %v380
    %1268 = vmatpush.msra.mxu0 %v376
    %1269 = vmatpush.msra.mxu0 %v372
    %1270 = vmatpush.msra.mxu0 %v368
    %1271 = vmatpush.msra.mxu0 %v364
    %1272 = vmatpush.msra.mxu0 %v360
    %1273 = vmatpush.msra.mxu0 %v356
    %1274 = vmatpush.msra.mxu0 %v352
    %1275 = vmatpush.msra.mxu0 %v348
    %1276 = vmatpush.msra.mxu0 %v344
    %1277 = vmatpush.msra.mxu0 %v340
    %1278 = vmatpush.msra.mxu0 %v336
    %1279 = vmatpush.msra.mxu0 %v332
    %1280 = vmatmul.f32.gmra.mxu0 %v1217
    %v1281 = vpop.f32.mrf.mxu0
    %v1282 = vadd.f32 0.0, %v1281
    %1283 = vdwg.mxu0
    %1284 = vmatpush.msra.mxu0 %v393
    %1285 = vmatpush.msra.mxu0 %v389
    %1286 = vmatpush.msra.mxu0 %v385
    %1287 = vmatpush.msra.mxu0 %v381
    %1288 = vmatpush.msra.mxu0 %v377
    %1289 = vmatpush.msra.mxu0 %v373
    %1290 = vmatpush.msra.mxu0 %v369
    %1291 = vmatpush.msra.mxu0 %v365
    %1292 = vmatpush.msra.mxu0 %v361
    %1293 = vmatpush.msra.mxu0 %v357
    %1294 = vmatpush.msra.mxu0 %v353
    %1295 = vmatpush.msra.mxu0 %v349
    %1296 = vmatpush.msra.mxu0 %v345
    %1297 = vmatpush.msra.mxu0 %v341
    %1298 = vmatpush.msra.mxu0 %v337
    %1299 = vmatpush.msra.mxu0 %v333
    %1300 = vmatmul.f32.gmra.mxu0 %v1217
    %v1301 = vpop.f32.mrf.mxu0
    %v1302 = vadd.f32 0.0, %v1301
    %1303 = vdwg.mxu0
    %v1304 = vadd.f32 %v1220, %v1242
    %v1305 = vadd.f32 %v1221, %v1262
    %v1306 = vadd.f32 %v1222, %v1282
    %v1307 = vadd.f32 %v1223, %v1302
    %v1308 = vxor.u32 %v1304, 2147483648
    %v1309 = vmul.f32 %v1308, 1.442695
    %v1310 = vpow.pop %v1309
    %v1311 = vadd.f32 %v1310, 1.0
    %v1312 = vrcp.pop %v1311
    %v1313 = vmul.f32 %v1311, %v1312
    %v1314 = vsub.f32 1.0, %v1313
    %v1315 = vmul.f32 %v1312, %v1314
    %v1316 = vadd.f32 %v1312, %v1315
    %vm1317 = vweird.f32 %v1311
    %vm1318 = vweird.f32 %v1312
    %vm1319 = vmor %vm1317, %vm1318
    %v1320 = vsel %vm1319, %v1312, %v1316
    %v1321 = vand.u32 2147483647, %v1311
    %vm1322 = vcmp.eq.f32.partialorder %v1321, 8.507059e+37
    %v1323 = vand.u32 %v1311, 2147483648
    %v1324 = vor.u32 1.1754944e-38, %v1323
    %v1325 = vsel %vm1322, %v1324, %v1320
    %v1326 = vmul.f32 1.0, %v1325
    %v1327 = vxor.u32 %v1305, 2147483648
    %v1328 = vmul.f32 %v1327, 1.442695
    %v1329 = vpow.pop %v1328
    %v1330 = vadd.f32 %v1329, 1.0
    %v1331 = vrcp.pop %v1330
    %v1332 = vmul.f32 %v1330, %v1331
    %v1333 = vsub.f32 1.0, %v1332
    %v1334 = vmul.f32 %v1331, %v1333
    %v1335 = vadd.f32 %v1331, %v1334
    %vm1336 = vweird.f32 %v1330
    %vm1337 = vweird.f32 %v1331
    %vm1338 = vmor %vm1336, %vm1337
    %v1339 = vsel %vm1338, %v1331, %v1335
    %v1340 = vand.u32 2147483647, %v1330
    %vm1341 = vcmp.eq.f32.partialorder %v1340, 8.507059e+37
    %v1342 = vand.u32 %v1330, 2147483648
    %v1343 = vor.u32 1.1754944e-38, %v1342
    %v1344 = vsel %vm1341, %v1343, %v1339
    %v1345 = vmul.f32 1.0, %v1344
    %v1346 = vtanh.pop %v1306
    %v1347 = vxor.u32 %v1307, 2147483648
    %v1348 = vmul.f32 %v1347, 1.442695
    %v1349 = vpow.pop %v1348
    %v1350 = vadd.f32 %v1349, 1.0
    %v1351 = vrcp.pop %v1350
    %v1352 = vmul.f32 %v1350, %v1351
    %v1353 = vsub.f32 1.0, %v1352
    %v1354 = vmul.f32 %v1351, %v1353
    %v1355 = vadd.f32 %v1351, %v1354
    %vm1356 = vweird.f32 %v1350
    %vm1357 = vweird.f32 %v1351
    %vm1358 = vmor %vm1356, %vm1357
    %v1359 = vsel %vm1358, %v1351, %v1355
    %v1360 = vand.u32 2147483647, %v1350
    %vm1361 = vcmp.eq.f32.partialorder %v1360, 8.507059e+37
    %v1362 = vand.u32 %v1350, 2147483648
    %v1363 = vor.u32 1.1754944e-38, %v1362
    %v1364 = vsel %vm1361, %v1363, %v1359
    %v1365 = vmul.f32 1.0, %v1364
    %v1366 = vmul.f32 %v1345, %v1218
    %v1367 = vmul.f32 %v1326, %v1346
    %v1368 = vadd.f32 %v1366, %v1367
    %v1369 = vtanh.pop %v1368
    %v1370 = vmul.f32 %v1365, %v1369
    %s1371 = sadd.s32 %s394, 5
    %v1372 = vstv %s1371
    %vm1373 = vcmp.lt.s32.totalorder %v1372, %v329
    %v1374 = vsel %vm1373, 1, 0
    %1375 = vset.pattern.permute.xlu0 0
    %1376 = vperm.xlu0 %1375, %v1374
    %v1377 = vpop.permute.xlu0 %1376
    %vm1378 = vcmp.eq.s32.totalorder %v1377, 1
    %v1379 = vsel %vm1378, %v1370, 0.0
    %s1380 = scalar_lea.vmem [#allocation11], 40
    %1381 = vst [vmem:[%s1380] sm:$0xff] %v1379
    %v1382 = vsel %vm1378, %v1370, %v1217
    %v1383 = vsel %vm1378, %v1368, %v1218
    %s1384 = scalar_lea.vmem [#allocation4], 192
    %v1385 = vld [vmem:[%s1384] sm:$0xff]
    %v1386 = vld [vmem:[%s1384 + $0x8] sm:$0xff]
    %v1387 = vld [vmem:[%s1384 + $0x10] sm:$0xff]
    %v1388 = vld [vmem:[%s1384 + $0x18] sm:$0xff]
    %1389 = vmatpush.msra.mxu0 %v390
    %1390 = vmatpush.msra.mxu0 %v386
    %1391 = vmatpush.msra.mxu0 %v382
    %1392 = vmatpush.msra.mxu0 %v378
    %1393 = vmatpush.msra.mxu0 %v374
    %1394 = vmatpush.msra.mxu0 %v370
    %1395 = vmatpush.msra.mxu0 %v366
    %1396 = vmatpush.msra.mxu0 %v362
    %1397 = vmatpush.msra.mxu0 %v358
    %1398 = vmatpush.msra.mxu0 %v354
    %1399 = vmatpush.msra.mxu0 %v350
    %1400 = vmatpush.msra.mxu0 %v346
    %1401 = vmatpush.msra.mxu0 %v342
    %1402 = vmatpush.msra.mxu0 %v338
    %1403 = vmatpush.msra.mxu0 %v334
    %1404 = vmatpush.msra.mxu0 %v330
    %1405 = vmatmul.f32.gmra.mxu0 %v1382
    %v1406 = vpop.f32.mrf.mxu0
    %v1407 = vadd.f32 0.0, %v1406
    %1408 = vdwg.mxu0
    %1409 = vmatpush.msra.mxu0 %v391
    %1410 = vmatpush.msra.mxu0 %v387
    %1411 = vmatpush.msra.mxu0 %v383
    %1412 = vmatpush.msra.mxu0 %v379
    %1413 = vmatpush.msra.mxu0 %v375
    %1414 = vmatpush.msra.mxu0 %v371
    %1415 = vmatpush.msra.mxu0 %v367
    %1416 = vmatpush.msra.mxu0 %v363
    %1417 = vmatpush.msra.mxu0 %v359
    %1418 = vmatpush.msra.mxu0 %v355
    %1419 = vmatpush.msra.mxu0 %v351
    %1420 = vmatpush.msra.mxu0 %v347
    %1421 = vmatpush.msra.mxu0 %v343
    %1422 = vmatpush.msra.mxu0 %v339
    %1423 = vmatpush.msra.mxu0 %v335
    %1424 = vmatpush.msra.mxu0 %v331
    %1425 = vmatmul.f32.gmra.mxu0 %v1382
    %v1426 = vpop.f32.mrf.mxu0
    %v1427 = vadd.f32 0.0, %v1426
    %1428 = vdwg.mxu0
    %1429 = vmatpush.msra.mxu0 %v392
    %1430 = vmatpush.msra.mxu0 %v388
    %1431 = vmatpush.msra.mxu0 %v384
    %1432 = vmatpush.msra.mxu0 %v380
    %1433 = vmatpush.msra.mxu0 %v376
    %1434 = vmatpush.msra.mxu0 %v372
    %1435 = vmatpush.msra.mxu0 %v368
    %1436 = vmatpush.msra.mxu0 %v364
    %1437 = vmatpush.msra.mxu0 %v360
    %1438 = vmatpush.msra.mxu0 %v356
    %1439 = vmatpush.msra.mxu0 %v352
    %1440 = vmatpush.msra.mxu0 %v348
    %1441 = vmatpush.msra.mxu0 %v344
    %1442 = vmatpush.msra.mxu0 %v340
    %1443 = vmatpush.msra.mxu0 %v336
    %1444 = vmatpush.msra.mxu0 %v332
    %1445 = vmatmul.f32.gmra.mxu0 %v1382
    %v1446 = vpop.f32.mrf.mxu0
    %v1447 = vadd.f32 0.0, %v1446
    %1448 = vdwg.mxu0
    %1449 = vmatpush.msra.mxu0 %v393
    %1450 = vmatpush.msra.mxu0 %v389
    %1451 = vmatpush.msra.mxu0 %v385
    %1452 = vmatpush.msra.mxu0 %v381
    %1453 = vmatpush.msra.mxu0 %v377
    %1454 = vmatpush.msra.mxu0 %v373
    %1455 = vmatpush.msra.mxu0 %v369
    %1456 = vmatpush.msra.mxu0 %v365
    %1457 = vmatpush.msra.mxu0 %v361
    %1458 = vmatpush.msra.mxu0 %v357
    %1459 = vmatpush.msra.mxu0 %v353
    %1460 = vmatpush.msra.mxu0 %v349
    %1461 = vmatpush.msra.mxu0 %v345
    %1462 = vmatpush.msra.mxu0 %v341
    %1463 = vmatpush.msra.mxu0 %v337
    %1464 = vmatpush.msra.mxu0 %v333
    %1465 = vmatmul.f32.gmra.mxu0 %v1382
    %v1466 = vpop.f32.mrf.mxu0
    %v1467 = vadd.f32 0.0, %v1466
    %1468 = vdwg.mxu0
    %v1469 = vadd.f32 %v1385, %v1407
    %v1470 = vadd.f32 %v1386, %v1427
    %v1471 = vadd.f32 %v1387, %v1447
    %v1472 = vadd.f32 %v1388, %v1467
    %v1473 = vxor.u32 %v1469, 2147483648
    %v1474 = vmul.f32 %v1473, 1.442695
    %v1475 = vpow.pop %v1474
    %v1476 = vadd.f32 %v1475, 1.0
    %v1477 = vrcp.pop %v1476
    %v1478 = vmul.f32 %v1476, %v1477
    %v1479 = vsub.f32 1.0, %v1478
    %v1480 = vmul.f32 %v1477, %v1479
    %v1481 = vadd.f32 %v1477, %v1480
    %vm1482 = vweird.f32 %v1476
    %vm1483 = vweird.f32 %v1477
    %vm1484 = vmor %vm1482, %vm1483
    %v1485 = vsel %vm1484, %v1477, %v1481
    %v1486 = vand.u32 2147483647, %v1476
    %vm1487 = vcmp.eq.f32.partialorder %v1486, 8.507059e+37
    %v1488 = vand.u32 %v1476, 2147483648
    %v1489 = vor.u32 1.1754944e-38, %v1488
    %v1490 = vsel %vm1487, %v1489, %v1485
    %v1491 = vmul.f32 1.0, %v1490
    %v1492 = vxor.u32 %v1470, 2147483648
    %v1493 = vmul.f32 %v1492, 1.442695
    %v1494 = vpow.pop %v1493
    %v1495 = vadd.f32 %v1494, 1.0
    %v1496 = vrcp.pop %v1495
    %v1497 = vmul.f32 %v1495, %v1496
    %v1498 = vsub.f32 1.0, %v1497
    %v1499 = vmul.f32 %v1496, %v1498
    %v1500 = vadd.f32 %v1496, %v1499
    %vm1501 = vweird.f32 %v1495
    %vm1502 = vweird.f32 %v1496
    %vm1503 = vmor %vm1501, %vm1502
    %v1504 = vsel %vm1503, %v1496, %v1500
    %v1505 = vand.u32 2147483647, %v1495
    %vm1506 = vcmp.eq.f32.partialorder %v1505, 8.507059e+37
    %v1507 = vand.u32 %v1495, 2147483648
    %v1508 = vor.u32 1.1754944e-38, %v1507
    %v1509 = vsel %vm1506, %v1508, %v1504
    %v1510 = vmul.f32 1.0, %v1509
    %v1511 = vtanh.pop %v1471
    %v1512 = vxor.u32 %v1472, 2147483648
    %v1513 = vmul.f32 %v1512, 1.442695
    %v1514 = vpow.pop %v1513
    %v1515 = vadd.f32 %v1514, 1.0
    %v1516 = vrcp.pop %v1515
    %v1517 = vmul.f32 %v1515, %v1516
    %v1518 = vsub.f32 1.0, %v1517
    %v1519 = vmul.f32 %v1516, %v1518
    %v1520 = vadd.f32 %v1516, %v1519
    %vm1521 = vweird.f32 %v1515
    %vm1522 = vweird.f32 %v1516
    %vm1523 = vmor %vm1521, %vm1522
    %v1524 = vsel %vm1523, %v1516, %v1520
    %v1525 = vand.u32 2147483647, %v1515
    %vm1526 = vcmp.eq.f32.partialorder %v1525, 8.507059e+37
    %v1527 = vand.u32 %v1515, 2147483648
    %v1528 = vor.u32 1.1754944e-38, %v1527
    %v1529 = vsel %vm1526, %v1528, %v1524
    %v1530 = vmul.f32 1.0, %v1529
    %v1531 = vmul.f32 %v1510, %v1383
    %v1532 = vmul.f32 %v1491, %v1511
    %v1533 = vadd.f32 %v1531, %v1532
    %v1534 = vtanh.pop %v1533
    %v1535 = vmul.f32 %v1530, %v1534
    %s1536 = sadd.s32 %s394, 6
    %v1537 = vstv %s1536
    %vm1538 = vcmp.lt.s32.totalorder %v1537, %v329
    %v1539 = vsel %vm1538, 1, 0
    %1540 = vset.pattern.permute.xlu0 0
    %1541 = vperm.xlu0 %1540, %v1539
    %v1542 = vpop.permute.xlu0 %1541
    %vm1543 = vcmp.eq.s32.totalorder %v1542, 1
    %v1544 = vsel %vm1543, %v1535, 0.0
    %s1545 = scalar_lea.vmem [#allocation11], 48
    %1546 = vst [vmem:[%s1545] sm:$0xff] %v1544
    %v1547 = vsel %vm1543, %v1535, %v1382
    %v1548 = vsel %vm1543, %v1533, %v1383
    %s1549 = scalar_lea.vmem [#allocation4], 224
    %v1550 = vld [vmem:[%s1549] sm:$0xff]
    %v1551 = vld [vmem:[%s1549 + $0x8] sm:$0xff]
    %v1552 = vld [vmem:[%s1549 + $0x10] sm:$0xff]
    %v1553 = vld [vmem:[%s1549 + $0x18] sm:$0xff]
    %1554 = vmatpush.msra.mxu0 %v390
    %1555 = vmatpush.msra.mxu0 %v386
    %1556 = vmatpush.msra.mxu0 %v382
    %1557 = vmatpush.msra.mxu0 %v378
    %1558 = vmatpush.msra.mxu0 %v374
    %1559 = vmatpush.msra.mxu0 %v370
    %1560 = vmatpush.msra.mxu0 %v366
    %1561 = vmatpush.msra.mxu0 %v362
    %1562 = vmatpush.msra.mxu0 %v358
    %1563 = vmatpush.msra.mxu0 %v354
    %1564 = vmatpush.msra.mxu0 %v350
    %1565 = vmatpush.msra.mxu0 %v346
    %1566 = vmatpush.msra.mxu0 %v342
    %1567 = vmatpush.msra.mxu0 %v338
    %1568 = vmatpush.msra.mxu0 %v334
    %1569 = vmatpush.msra.mxu0 %v330
    %1570 = vmatmul.f32.gmra.mxu0 %v1547
    %v1571 = vpop.f32.mrf.mxu0
    %v1572 = vadd.f32 0.0, %v1571
    %1573 = vdwg.mxu0
    %1574 = vmatpush.msra.mxu0 %v391
    %1575 = vmatpush.msra.mxu0 %v387
    %1576 = vmatpush.msra.mxu0 %v383
    %1577 = vmatpush.msra.mxu0 %v379
    %1578 = vmatpush.msra.mxu0 %v375
    %1579 = vmatpush.msra.mxu0 %v371
    %1580 = vmatpush.msra.mxu0 %v367
    %1581 = vmatpush.msra.mxu0 %v363
    %1582 = vmatpush.msra.mxu0 %v359
    %1583 = vmatpush.msra.mxu0 %v355
    %1584 = vmatpush.msra.mxu0 %v351
    %1585 = vmatpush.msra.mxu0 %v347
    %1586 = vmatpush.msra.mxu0 %v343
    %1587 = vmatpush.msra.mxu0 %v339
    %1588 = vmatpush.msra.mxu0 %v335
    %1589 = vmatpush.msra.mxu0 %v331
    %1590 = vmatmul.f32.gmra.mxu0 %v1547
    %v1591 = vpop.f32.mrf.mxu0
    %v1592 = vadd.f32 0.0, %v1591
    %1593 = vdwg.mxu0
    %1594 = vmatpush.msra.mxu0 %v392
    %1595 = vmatpush.msra.mxu0 %v388
    %1596 = vmatpush.msra.mxu0 %v384
    %1597 = vmatpush.msra.mxu0 %v380
    %1598 = vmatpush.msra.mxu0 %v376
    %1599 = vmatpush.msra.mxu0 %v372
    %1600 = vmatpush.msra.mxu0 %v368
    %1601 = vmatpush.msra.mxu0 %v364
    %1602 = vmatpush.msra.mxu0 %v360
    %1603 = vmatpush.msra.mxu0 %v356
    %1604 = vmatpush.msra.mxu0 %v352
    %1605 = vmatpush.msra.mxu0 %v348
    %1606 = vmatpush.msra.mxu0 %v344
    %1607 = vmatpush.msra.mxu0 %v340
    %1608 = vmatpush.msra.mxu0 %v336
    %1609 = vmatpush.msra.mxu0 %v332
    %1610 = vmatmul.f32.gmra.mxu0 %v1547
    %v1611 = vpop.f32.mrf.mxu0
    %v1612 = vadd.f32 0.0, %v1611
    %1613 = vdwg.mxu0
    %1614 = vmatpush.msra.mxu0 %v393
    %1615 = vmatpush.msra.mxu0 %v389
    %1616 = vmatpush.msra.mxu0 %v385
    %1617 = vmatpush.msra.mxu0 %v381
    %1618 = vmatpush.msra.mxu0 %v377
    %1619 = vmatpush.msra.mxu0 %v373
    %1620 = vmatpush.msra.mxu0 %v369
    %1621 = vmatpush.msra.mxu0 %v365
    %1622 = vmatpush.msra.mxu0 %v361
    %1623 = vmatpush.msra.mxu0 %v357
    %1624 = vmatpush.msra.mxu0 %v353
    %1625 = vmatpush.msra.mxu0 %v349
    %1626 = vmatpush.msra.mxu0 %v345
    %1627 = vmatpush.msra.mxu0 %v341
    %1628 = vmatpush.msra.mxu0 %v337
    %1629 = vmatpush.msra.mxu0 %v333
    %1630 = vmatmul.f32.gmra.mxu0 %v1547
    %v1631 = vpop.f32.mrf.mxu0
    %v1632 = vadd.f32 0.0, %v1631
    %1633 = vdwg.mxu0
    %v1634 = vadd.f32 %v1550, %v1572
    %v1635 = vadd.f32 %v1551, %v1592
    %v1636 = vadd.f32 %v1552, %v1612
    %v1637 = vadd.f32 %v1553, %v1632
    %v1638 = vxor.u32 %v1634, 2147483648
    %v1639 = vmul.f32 %v1638, 1.442695
    %v1640 = vpow.pop %v1639
    %v1641 = vadd.f32 %v1640, 1.0
    %v1642 = vrcp.pop %v1641
    %v1643 = vmul.f32 %v1641, %v1642
    %v1644 = vsub.f32 1.0, %v1643
    %v1645 = vmul.f32 %v1642, %v1644
    %v1646 = vadd.f32 %v1642, %v1645
    %vm1647 = vweird.f32 %v1641
    %vm1648 = vweird.f32 %v1642
    %vm1649 = vmor %vm1647, %vm1648
    %v1650 = vsel %vm1649, %v1642, %v1646
    %v1651 = vand.u32 2147483647, %v1641
    %vm1652 = vcmp.eq.f32.partialorder %v1651, 8.507059e+37
    %v1653 = vand.u32 %v1641, 2147483648
    %v1654 = vor.u32 1.1754944e-38, %v1653
    %v1655 = vsel %vm1652, %v1654, %v1650
    %v1656 = vmul.f32 1.0, %v1655
    %v1657 = vxor.u32 %v1635, 2147483648
    %v1658 = vmul.f32 %v1657, 1.442695
    %v1659 = vpow.pop %v1658
    %v1660 = vadd.f32 %v1659, 1.0
    %v1661 = vrcp.pop %v1660
    %v1662 = vmul.f32 %v1660, %v1661
    %v1663 = vsub.f32 1.0, %v1662
    %v1664 = vmul.f32 %v1661, %v1663
    %v1665 = vadd.f32 %v1661, %v1664
    %vm1666 = vweird.f32 %v1660
    %vm1667 = vweird.f32 %v1661
    %vm1668 = vmor %vm1666, %vm1667
    %v1669 = vsel %vm1668, %v1661, %v1665
    %v1670 = vand.u32 2147483647, %v1660
    %vm1671 = vcmp.eq.f32.partialorder %v1670, 8.507059e+37
    %v1672 = vand.u32 %v1660, 2147483648
    %v1673 = vor.u32 1.1754944e-38, %v1672
    %v1674 = vsel %vm1671, %v1673, %v1669
    %v1675 = vmul.f32 1.0, %v1674
    %v1676 = vtanh.pop %v1636
    %v1677 = vxor.u32 %v1637, 2147483648
    %v1678 = vmul.f32 %v1677, 1.442695
    %v1679 = vpow.pop %v1678
    %v1680 = vadd.f32 %v1679, 1.0
    %v1681 = vrcp.pop %v1680
    %v1682 = vmul.f32 %v1680, %v1681
    %v1683 = vsub.f32 1.0, %v1682
    %v1684 = vmul.f32 %v1681, %v1683
    %v1685 = vadd.f32 %v1681, %v1684
    %vm1686 = vweird.f32 %v1680
    %vm1687 = vweird.f32 %v1681
    %vm1688 = vmor %vm1686, %vm1687
    %v1689 = vsel %vm1688, %v1681, %v1685
    %v1690 = vand.u32 2147483647, %v1680
    %vm1691 = vcmp.eq.f32.partialorder %v1690, 8.507059e+37
    %v1692 = vand.u32 %v1680, 2147483648
    %v1693 = vor.u32 1.1754944e-38, %v1692
    %v1694 = vsel %vm1691, %v1693, %v1689
    %v1695 = vmul.f32 1.0, %v1694
    %v1696 = vmul.f32 %v1675, %v1548
    %v1697 = vmul.f32 %v1656, %v1676
    %v1698 = vadd.f32 %v1696, %v1697
    %v1699 = vtanh.pop %v1698
    %v1700 = vmul.f32 %v1695, %v1699
    %s1701 = sadd.s32 %s394, 7
    %v1702 = vstv %s1701
    %vm1703 = vcmp.lt.s32.totalorder %v1702, %v329
    %v1704 = vsel %vm1703, 1, 0
    %1705 = vset.pattern.permute.xlu0 0
    %1706 = vperm.xlu0 %1705, %v1704
    %v1707 = vpop.permute.xlu0 %1706
    %vm1708 = vcmp.eq.s32.totalorder %v1707, 1
    %v1709 = vsel %vm1708, %v1700, 0.0
    %s1710 = scalar_lea.vmem [#allocation11], 56
    %1711 = vst [vmem:[%s1710] sm:$0xff] %v1709
    %v1712 = vsel %vm1708, %v1700, %v1547
    %v1713 = vsel %vm1708, %v1698, %v1548
    %1714 = vst [vmem:[#allocation2] sm:$0xff] %v1712
    %1715 = vst [vmem:[#allocation3] sm:$0xff] %v1713
    // Predicated region
    $region38: #{tpu_custom_call.1} parent=1 // pred_check
      _
    $region39: #{tpu_custom_call.1} parent=1 // pred_check_branch
      %1717 = sbr.rel (0) target = $region41
    $region40: #{tpu_custom_call.1} parent=1 // pred_region
      %1719 = vsyncadd [#allocation7], 0
      %s1720 = sshll.u32 [#allocation11], 4
      %s1721 = int_to_ptr.vmem [resolvable:$true] %s1720
      %s1722 = sshll.u32 %s5, 4
      %s1723 = int_to_ptr.hbm [resolvable:$true] %s1722
      %1728 = dma.vmem_to_hbm [thread:$0]  %s1721, 1024, %s1723, [#allocation7], 128, 128, 8
    $region41: #{tpu_custom_call.1} parent=1 // pred_fallthru
      _
    // Predicated region
    $region42: #{tpu_custom_call.1} parent=1 // pred_check
      _
    $region43: #{tpu_custom_call.1} parent=1 // pred_check_branch
      %1730 = sbr.rel (0) target = $region45
    $region44: #{tpu_custom_call.1} parent=1 // pred_region
      %1732 = dma.done [#allocation7], 1024
    $region45: #{tpu_custom_call.1} parent=1 // pred_fallthru
      _
    %1733 = vsyncpa [#allocation6], 1
    %1734 = vsyncpa [#allocation9], 1
    %1735 = vsyncpa [#allocation7], 1

</llo_original>
